<compile_context>
chip_gen: v7x
topology: tpu7x:2x2x1
jax: 0.10.0
libtpu: 0.0.40
codegen_flags: <defaults>
</compile_context>

<pallas_src>
import functools
import math

import jax
import jax.numpy as jnp
from jax.experimental import pallas as pl
from jax.experimental.pallas import tpu as pltpu

# TODO(synk): `eps` is an undefined global in the original PyTorch source; a
# small constant (1e-10, as commonly used in hin2vec implementations) is used.
EPS = 1e-10


def _bce_masked_sum(s, gt, mask):
    """Naive (PyTorch-matching) BCE on pre-sigmoid scores s; masked sum."""
    pred = jax.nn.sigmoid(s)
    loss = -(gt * jnp.log(pred + EPS) + (1.0 - gt) * jnp.log(1.0 - pred + EPS))
    return jnp.sum(loss * mask)


def _resident_kernel(node_t_ref, rel_t_ref, a1_ref, a2_ref, r_ref, gt_ref,
                     out_ref, *, batch, tb, vocab, n_rel):
    """Tables resident in VMEM; in-kernel one-hot gathers; batch on lanes.

    node_t_ref: (D, V) f32 node table (transposed), resident.
    rel_t_ref:  (D, R) f32 sigmoid(relation table) (transposed), resident.
    a1/a2/r/gt refs: (1, 1, tb) lane-dense index / label blocks.
    out_ref:    (1, 8, 128) per-tile partial-sum block.
    """
    node_t = node_t_ref[...]          # (D, V)
    rel_t = rel_t_ref[...]            # (D, R)

    def gather_cols(table_t, idx, n):
        # idx: (1, tb) int32.  Exact gather of columns via one-hot matmul
        # (products are x*1.0 / x*0.0, so full precision keeps it exact).
        onehot = (jax.lax.broadcasted_iota(jnp.int32, (n, tb), 0)
                  == idx).astype(jnp.float32)                  # (n, tb)
        return jnp.dot(table_t, onehot,
                       preferred_element_type=jnp.float32,
                       precision=jax.lax.Precision.HIGHEST)    # (D, tb)

    e1 = gather_cols(node_t, a1_ref[0], vocab)
    e2 = gather_cols(node_t, a2_ref[0], vocab)
    er = gather_cols(rel_t, r_ref[0], n_rel)                   # already sigmoid'd

    s = jnp.sum(e1 * e2 * er, axis=0, keepdims=True)           # (1, tb)
    gt = gt_ref[0]                                             # (1, tb)

    # In-kernel padding mask (batch is a static Python int closed over).
    row = (pl.program_id(0) * tb
           + jax.lax.broadcasted_iota(jnp.int32, (1, tb), 1))
    mask = (row < batch).astype(jnp.float32)

    partial = _bce_masked_sum(s, gt, mask)
    # Splat into a lane-dense (1, 8, 128) block -> unmasked stores; the
    # wrapper reads element [tile, 0, 0] of each block and sums.
    out_ref[...] = jnp.full(out_ref.shape, partial, dtype=jnp.float32)


def _streaming_kernel(rel_t_ref, e1_ref, e2_ref, r_ref, gt_ref, out_ref, *,
                      batch, tb, n_rel):
    """Fallback for huge vocab: e1/e2 streamed (tb, D); rel table resident."""
    onehot = (jax.lax.broadcasted_iota(jnp.int32, (tb, n_rel), 1)
              == r_ref[...]).astype(jnp.float32)               # (tb, R)
    er = jnp.dot(onehot, rel_t_ref[...],
                 preferred_element_type=jnp.float32,
                 precision=jax.lax.Precision.HIGHEST)          # (tb, D)

    s = jnp.sum(e1_ref[...] * e2_ref[...] * er, axis=1, keepdims=True)  # (tb,1)

    row = (pl.program_id(0) * tb
           + jax.lax.broadcasted_iota(jnp.int32, (tb, 1), 0))
    mask = (row < batch).astype(jnp.float32)

    partial = _bce_masked_sum(s, gt_ref[...], mask)
    out_ref[...] = jnp.full(out_ref.shape, partial, dtype=jnp.float32)


def hin2vec_forward(node_emb, rel_emb, attr1, attr2, rel, ground_truth, *,
                    block_b=1024, force_streaming=False):
    """Pallas implementation of Hin2Vec_model.forward -> scalar loss."""
    B = int(attr1.shape[0])
    V, D = node_emb.shape
    R = rel_emb.shape[0]
    f32 = jnp.float32

    # Hoist sigmoid onto the tiny (R, D) relation table once.
    sig_rel = jax.nn.sigmoid(rel_emb.astype(f32))

    # Resident path when the node table comfortably fits VMEM and the
    # one-hot gather stays cheap; otherwise fall back to streaming.
    table_bytes = V * D * 4
    use_resident = ((not force_streaming)
                    and table_bytes <= (8 << 20) and V <= 4096)

    # Batch tile: forced multiple of 8 sublanes; capped so buffers fit the
    # scoped-VMEM budget on all of v5e (16 MiB default) / v6e / v7x.
    b_round = pl.cdiv(B, 8) * 8
    tb = min(block_b, b_round)
    if use_resident:
        tb = min(tb, max(8, (4 << 20) // (V * 4)))     # bound (V, tb) one-hots
    else:
        tb = min(tb, max(8, (4 << 20) // (D * 4)))     # bound (tb, D) streams
    tb = max(8, (tb // 8) * 8)
    num_tiles = pl.cdiv(B, tb)
    b_pad = num_tiles * tb
    pad = b_pad - B

    a1 = attr1.astype(jnp.int32)
    a2 = attr2.astype(jnp.int32)
    rl = rel.astype(jnp.int32)
    gt = ground_truth.astype(f32).reshape(B)
    if pad:
        a1 = jnp.pad(a1, (0, pad))     # pad with index 0 (valid); masked out
        a2 = jnp.pad(a2, (0, pad))
        rl = jnp.pad(rl, (0, pad))
        gt = jnp.pad(gt, (0, pad))

    out_shape = jax.ShapeDtypeStruct((num_tiles, 8, 128), f32)
    out_spec = pl.BlockSpec((1, 8, 128), lambda i: (i, 0, 0))

    if use_resident:
        node_t = node_emb.astype(f32).T                # (D, V) resident
        rel_t = sig_rel.T                              # (D, R) resident
        a1 = a1.reshape(num_tiles, 1, tb)
        a2 = a2.reshape(num_tiles, 1, tb)
        rl = rl.reshape(num_tiles, 1, tb)
        gt = gt.reshape(num_tiles, 1, tb)
        lane_spec = pl.BlockSpec((1, 1, tb), lambda i: (i, 0, 0))
        kernel = functools.partial(_resident_kernel, batch=B, tb=tb,
                                   vocab=V, n_rel=R)
        in_specs = [
            pl.BlockSpec((D, V), lambda i: (0, 0)),    # node table, resident
            pl.BlockSpec((D, R), lambda i: (0, 0)),    # sigmoid(rel) table
            lane_spec, lane_spec, lane_spec, lane_spec,
        ]
        args = (node_t, rel_t, a1, a2, rl, gt)
    else:
        # Wrapper-side node gathers streamed as (tb, D) rows.
        node_f32 = node_emb.astype(f32)
        e1 = jnp.take(node_f32, a1, axis=0)            # (b_pad, D)
        e2 = jnp.take(node_f32, a2, axis=0)
        rl = rl.reshape(b_pad, 1)
        gt = gt.reshape(b_pad, 1)
        row_spec = pl.BlockSpec((tb, D), lambda i: (i, 0))
        col_spec = pl.BlockSpec((tb, 1), lambda i: (i, 0))
        kernel = functools.partial(_streaming_kernel, batch=B, tb=tb, n_rel=R)
        in_specs = [
            pl.BlockSpec((R, D), lambda i: (0, 0)),    # sigmoid(rel) table
            row_spec, row_spec, col_spec, col_spec,
        ]
        args = (sig_rel, e1, e2, rl, gt)

    partials = pl.pallas_call(
        kernel,
        out_shape=out_shape,
        grid=(num_tiles,),
        in_specs=in_specs,
        out_specs=out_spec,
        compiler_params=pltpu.CompilerParams(
            dimension_semantics=("parallel",),          # independent tiles
            vmem_limit_bytes=32 * 1024 * 1024),         # safe on v5e/v6e/v7x
    )(*args)

    # Tiny final reduction over per-tile partials.
    return jnp.sum(partials[:, 0, 0])


def hin2vec_reference(node_emb, rel_emb, attr1, attr2, rel, ground_truth):
    """Pure-JAX reference mirroring the PyTorch forward."""
    e1 = node_emb[attr1]
    e2 = node_emb[attr2]
    er = jax.nn.sigmoid(rel_emb[rel])
    pred = jax.nn.sigmoid(jnp.sum(e1 * e2 * er, axis=1))
    loss = -(ground_truth * jnp.log(pred + EPS)
             + (1.0 - ground_truth) * jnp.log(1.0 - pred + EPS))
    return jnp.sum(loss)


if __name__ == "__main__":
    # Small, module-consistent sizes (batch chosen to exercise multi-tile +
    # padding + in-kernel mask paths with block_b=64).
    input_data_size = 50      # vocabulary (node) count
    relation_size = 6         # number of relation types
    embedding_dim = 32        # embedding dimension
    batch = 200               # number of (attr1, attr2, rel, label) samples

    key = jax.random.PRNGKey(0)
    k_emb, k_rel, k_a1, k_a2, k_r, k_gt = jax.random.split(key, 6)

    # init_emb(): normal(0, 1/sqrt(embedding_size)) for BOTH tables.
    std = 1.0 / math.sqrt(input_data_size)
    node_emb = (jax.random.normal(k_emb, (input_data_size, embedding_dim),
                                  dtype=jnp.float32) * std)
    rel_emb = (jax.random.normal(k_rel, (relation_size, embedding_dim),
                                 dtype=jnp.float32) * std)

    attr1 = jax.random.randint(k_a1, (batch,), 0, input_data_size, dtype=jnp.int32)
    attr2 = jax.random.randint(k_a2, (batch,), 0, input_data_size, dtype=jnp.int32)
    rel = jax.random.randint(k_r, (batch,), 0, relation_size, dtype=jnp.int32)
    ground_truth = jax.random.bernoulli(k_gt, 0.5, (batch,)).astype(jnp.float32)

    ref = hin2vec_reference(node_emb, rel_emb, attr1, attr2, rel, ground_truth)

    # Primary path: tables resident in VMEM, in-kernel gathers.
    loss = hin2vec_forward(node_emb, rel_emb, attr1, attr2, rel, ground_truth,
                           block_b=64)
    loss = jax.block_until_ready(loss)
    assert jnp.allclose(loss, ref, rtol=1e-5, atol=1e-4), (loss, ref)

    # Fallback path (huge-vocab streaming variant) exercised for coverage.
    loss_s = hin2vec_forward(node_emb, rel_emb, attr1, attr2, rel, ground_truth,
                             block_b=64, force_streaming=True)
    loss_s = jax.block_until_ready(loss_s)
    assert jnp.allclose(loss_s, ref, rtol=1e-5, atol=1e-4), (loss_s, ref)

    print("KERNEL_OK")
</pallas_src>

<mosaic_0001>
module attributes {stable_mosaic.version = 11 : i64} {
  func.func @_resident_kernel(%arg0: i32, %arg1: memref<32x50xf32, #tpu.memory_space<vmem>>, %arg2: memref<32x6xf32, #tpu.memory_space<vmem>>, %arg3: memref<1x1x64xi32, #tpu.memory_space<vmem>>, %arg4: memref<1x1x64xi32, #tpu.memory_space<vmem>>, %arg5: memref<1x1x64xi32, #tpu.memory_space<vmem>>, %arg6: memref<1x1x64xf32, #tpu.memory_space<vmem>>, %arg7: memref<1x8x128xf32, #tpu.memory_space<vmem>>) attributes {dimension_semantics = [#tpu.dimension_semantics<parallel>], iteration_bounds = array<i64: 4>, scalar_prefetch = 0 : i64, scratch_operands = 0 : i64, tpu.core_type = #tpu.core_type<tc>, window_params = [{pipeline_mode = #tpu.pipeline_mode<synchronous>, transform_indices = @transform_0, window_bounds = array<i64: 32, 50>}, {pipeline_mode = #tpu.pipeline_mode<synchronous>, transform_indices = @transform_1, window_bounds = array<i64: 32, 6>}, {transform_indices = @transform_2, window_bounds = array<i64: 1, 1, 64>}, {transform_indices = @transform_3, window_bounds = array<i64: 1, 1, 64>}, {transform_indices = @transform_4, window_bounds = array<i64: 1, 1, 64>}, {transform_indices = @transform_5, window_bounds = array<i64: 1, 1, 64>}, {transform_indices = @transform_6, window_bounds = array<i64: 1, 8, 128>}]} {
    %c0 = arith.constant 0 : index
    %c0_0 = arith.constant 0 : index
    %0 = vector.load %arg1[%c0, %c0_0] : memref<32x50xf32, #tpu.memory_space<vmem>>, vector<32x50xf32>
    %c0_1 = arith.constant 0 : index
    %c0_2 = arith.constant 0 : index
    %1 = vector.load %arg2[%c0_1, %c0_2] : memref<32x6xf32, #tpu.memory_space<vmem>>, vector<32x6xf32>
    %c0_3 = arith.constant 0 : index
    %c0_4 = arith.constant 0 : index
    %c0_5 = arith.constant 0 : index
    %2 = vector.load %arg3[%c0_3, %c0_4, %c0_5] : memref<1x1x64xi32, #tpu.memory_space<vmem>>, vector<1x1x64xi32>
    %3 = vector.shape_cast %2 : vector<1x1x64xi32> to vector<1x64xi32>
    %4 = tpu.iota {dimensions = array<i32: 0>} : vector<50x64xi32>
    %5 = vector.broadcast %3 : vector<1x64xi32> to vector<50x64xi32>
    %6 = arith.cmpi eq, %4, %5 : vector<50x64xi32>
    %7 = arith.extui %6 : vector<50x64xi1> to vector<50x64xi32>
    %8 = arith.sitofp %7 : vector<50x64xi32> to vector<50x64xf32>
    %cst = arith.constant dense<0.000000e+00> : vector<32x64xf32>
    %9 = tpu.matmul %0, %8, %cst {dimension_numbers = #tpu.dot_dimension_numbers<[1], [0], [0], [1], [0, 0, 1, 1], [], []>, precision = #tpu.contract_precision<fp32>} : vector<32x50xf32>, vector<50x64xf32>, vector<32x64xf32> -> vector<32x64xf32>
    %c0_6 = arith.constant 0 : index
    %c0_7 = arith.constant 0 : index
    %c0_8 = arith.constant 0 : index
    %10 = vector.load %arg4[%c0_6, %c0_7, %c0_8] : memref<1x1x64xi32, #tpu.memory_space<vmem>>, vector<1x1x64xi32>
    %11 = vector.shape_cast %10 : vector<1x1x64xi32> to vector<1x64xi32>
    %12 = tpu.iota {dimensions = array<i32: 0>} : vector<50x64xi32>
    %13 = vector.broadcast %11 : vector<1x64xi32> to vector<50x64xi32>
    %14 = arith.cmpi eq, %12, %13 : vector<50x64xi32>
    %15 = arith.extui %14 : vector<50x64xi1> to vector<50x64xi32>
    %16 = arith.sitofp %15 : vector<50x64xi32> to vector<50x64xf32>
    %cst_9 = arith.constant dense<0.000000e+00> : vector<32x64xf32>
    %17 = tpu.matmul %0, %16, %cst_9 {dimension_numbers = #tpu.dot_dimension_numbers<[1], [0], [0], [1], [0, 0, 1, 1], [], []>, precision = #tpu.contract_precision<fp32>} : vector<32x50xf32>, vector<50x64xf32>, vector<32x64xf32> -> vector<32x64xf32>
    %c0_10 = arith.constant 0 : index
    %c0_11 = arith.constant 0 : index
    %c0_12 = arith.constant 0 : index
    %18 = vector.load %arg5[%c0_10, %c0_11, %c0_12] : memref<1x1x64xi32, #tpu.memory_space<vmem>>, vector<1x1x64xi32>
    %19 = vector.shape_cast %18 : vector<1x1x64xi32> to vector<1x64xi32>
    %20 = tpu.iota {dimensions = array<i32: 0>} : vector<6x64xi32>
    %21 = vector.broadcast %19 : vector<1x64xi32> to vector<6x64xi32>
    %22 = arith.cmpi eq, %20, %21 : vector<6x64xi32>
    %23 = arith.extui %22 : vector<6x64xi1> to vector<6x64xi32>
    %24 = arith.sitofp %23 : vector<6x64xi32> to vector<6x64xf32>
    %cst_13 = arith.constant dense<0.000000e+00> : vector<32x64xf32>
    %25 = tpu.matmul %1, %24, %cst_13 {dimension_numbers = #tpu.dot_dimension_numbers<[1], [0], [0], [1], [0, 0, 1, 1], [], []>, precision = #tpu.contract_precision<fp32>} : vector<32x6xf32>, vector<6x64xf32>, vector<32x64xf32> -> vector<32x64xf32>
    %26 = arith.mulf %9, %17 : vector<32x64xf32>
    %27 = arith.mulf %26, %25 : vector<32x64xf32>
    %cst_14 = arith.constant dense<0.000000e+00> : vector<64xf32>
    %28 = vector.multi_reduction <add>, %27, %cst_14 [0] : vector<32x64xf32> to vector<64xf32>
    %29 = vector.shape_cast %28 : vector<64xf32> to vector<1x64xf32>
    %c0_15 = arith.constant 0 : index
    %c0_16 = arith.constant 0 : index
    %c0_17 = arith.constant 0 : index
    %30 = vector.load %arg6[%c0_15, %c0_16, %c0_17] : memref<1x1x64xf32, #tpu.memory_space<vmem>>, vector<1x1x64xf32>
    %31 = vector.shape_cast %30 : vector<1x1x64xf32> to vector<1x64xf32>
    %c64_i32 = arith.constant 64 : i32
    %32 = arith.muli %arg0, %c64_i32 : i32
    %33 = tpu.iota {dimensions = array<i32: 1>} : vector<1x64xi32>
    %34 = vector.broadcast %32 : i32 to vector<1x64xi32>
    %35 = arith.addi %34, %33 : vector<1x64xi32>
    %c200_i32 = arith.constant 200 : i32
    %36 = vector.broadcast %c200_i32 : i32 to vector<1x64xi32>
    %37 = arith.cmpi slt, %35, %36 : vector<1x64xi32>
    %38 = arith.extui %37 : vector<1x64xi1> to vector<1x64xi32>
    %39 = arith.sitofp %38 : vector<1x64xi32> to vector<1x64xf32>
    %40 = arith.negf %29 : vector<1x64xf32>
    %41 = math.exp %40 : vector<1x64xf32>
    %cst_18 = arith.constant 1.000000e+00 : f32
    %42 = vector.broadcast %cst_18 : f32 to vector<1x64xf32>
    %43 = arith.addf %42, %41 : vector<1x64xf32>
    %44 = arith.divf %42, %43 : vector<1x64xf32>
    %cst_19 = arith.constant 1.000000e-10 : f32
    %45 = vector.broadcast %cst_19 : f32 to vector<1x64xf32>
    %46 = arith.addf %44, %45 : vector<1x64xf32>
    %47 = math.log %46 : vector<1x64xf32>
    %48 = arith.mulf %31, %47 : vector<1x64xf32>
    %cst_20 = arith.constant 1.000000e+00 : f32
    %49 = vector.broadcast %cst_20 : f32 to vector<1x64xf32>
    %50 = arith.subf %49, %31 : vector<1x64xf32>
    %cst_21 = arith.constant 1.000000e+00 : f32
    %51 = vector.broadcast %cst_21 : f32 to vector<1x64xf32>
    %52 = arith.subf %51, %44 : vector<1x64xf32>
    %cst_22 = arith.constant 1.000000e-10 : f32
    %53 = vector.broadcast %cst_22 : f32 to vector<1x64xf32>
    %54 = arith.addf %52, %53 : vector<1x64xf32>
    %55 = math.log %54 : vector<1x64xf32>
    %56 = arith.mulf %50, %55 : vector<1x64xf32>
    %57 = arith.addf %48, %56 : vector<1x64xf32>
    %cst_23 = arith.constant 0.000000e+00 : f32
    %58 = vector.broadcast %cst_23 : f32 to vector<1x64xf32>
    %59 = arith.subf %58, %57 : vector<1x64xf32>
    %60 = arith.mulf %59, %39 : vector<1x64xf32>
    %61 = vector.shape_cast %60 : vector<1x64xf32> to vector<1x1x64xf32>
    %cst_24 = arith.constant dense<0.000000e+00> : vector<1xf32>
    %62 = vector.multi_reduction <add>, %61, %cst_24 [1, 2] : vector<1x1x64xf32> to vector<1xf32>
    %63 = vector.shape_cast %62 : vector<1xf32> to vector<1x1x1xf32>
    %64 = vector.extract %63[0, 0, 0] : f32 from vector<1x1x1xf32>
    %65 = vector.broadcast %64 : f32 to vector<1x8x128xf32>
    %c0_25 = arith.constant 0 : index
    %c0_26 = arith.constant 0 : index
    %c0_27 = arith.constant 0 : index
    %66 = vector.load %arg7[%c0_25, %c0_26, %c0_27] : memref<1x8x128xf32, #tpu.memory_space<vmem>>, vector<1x8x128xf32>
    tpu.vector_store %arg7[%c0_25, %c0_26, %c0_27], %65 {strides = array<i32>} : memref<1x8x128xf32, #tpu.memory_space<vmem>>, vector<1x8x128xf32>,
    return
  }
  func.func @transform_0(%arg0: i32) -> (i32, i32) {
    %c0_i32 = arith.constant 0 : i32
    %c0_i32_0 = arith.constant 0 : i32
    %c0_i32_1 = arith.constant 0 : i32
    return %c0_i32, %c0_i32_0 : i32, i32
  }
  func.func @transform_1(%arg0: i32) -> (i32, i32) {
    %c0_i32 = arith.constant 0 : i32
    %c0_i32_0 = arith.constant 0 : i32
    %c0_i32_1 = arith.constant 0 : i32
    return %c0_i32, %c0_i32_0 : i32, i32
  }
  func.func @transform_2(%arg0: i32) -> (i32, i32, i32) {
    %c0_i32 = arith.constant 0 : i32
    %c0_i32_0 = arith.constant 0 : i32
    %c0_i32_1 = arith.constant 0 : i32
    return %arg0, %c0_i32, %c0_i32_0 : i32, i32, i32
  }
  func.func @transform_3(%arg0: i32) -> (i32, i32, i32) {
    %c0_i32 = arith.constant 0 : i32
    %c0_i32_0 = arith.constant 0 : i32
    %c0_i32_1 = arith.constant 0 : i32
    return %arg0, %c0_i32, %c0_i32_0 : i32, i32, i32
  }
  func.func @transform_4(%arg0: i32) -> (i32, i32, i32) {
    %c0_i32 = arith.constant 0 : i32
    %c0_i32_0 = arith.constant 0 : i32
    %c0_i32_1 = arith.constant 0 : i32
    return %arg0, %c0_i32, %c0_i32_0 : i32, i32, i32
  }
  func.func @transform_5(%arg0: i32) -> (i32, i32, i32) {
    %c0_i32 = arith.constant 0 : i32
    %c0_i32_0 = arith.constant 0 : i32
    %c0_i32_1 = arith.constant 0 : i32
    return %arg0, %c0_i32, %c0_i32_0 : i32, i32, i32
  }
  func.func @transform_6(%arg0: i32) -> (i32, i32, i32) {
    %c0_i32 = arith.constant 0 : i32
    %c0_i32_0 = arith.constant 0 : i32
    %c0_i32_1 = arith.constant 0 : i32
    return %arg0, %c0_i32, %c0_i32_0 : i32, i32, i32
  }
}

</mosaic_0001>

<llo_original>
// kernel: tpu_custom_call.1
$region0: #{tpu_custom_call.1}
  #allocation0 [shape = 'u32[]', space=smem, size = 0x4, offset = 0x4, fixed_abs, tag = 'smem constant byte address 0x4 - core index']
  #allocation1 [shape = 'u32[144,128]{1,0:T(1,128)}', space=vmem, size = 0x12000, scoped, tag = 'internal scratch']
  %s0 = inlined_call_operand.vmem [shape: f32[32,50], index: 0, kind: input, shape index: {}]
  %s1 = inlined_call_operand.vmem [shape: f32[32,6], index: 1, kind: input, shape index: {}]
  %s2 = inlined_call_operand.vmem [shape: s32[4,1,64], index: 2, kind: input, shape index: {}]
  %s3 = inlined_call_operand.vmem [shape: s32[4,1,64], index: 3, kind: input, shape index: {}]
  %s4 = inlined_call_operand.vmem [shape: s32[4,1,64], index: 4, kind: input, shape index: {}]
  %s5 = inlined_call_operand.vmem [shape: f32[4,1,64], index: 5, kind: input, shape index: {}]
  %s6 = inlined_call_operand.hbm [shape: f32[4,8,128], index: 6, kind: output, shape index: {}]
  %s7 = sld [smem:[#allocation0]]
  $region57: #{tpu_custom_call.1} parent=0
    _
  %s9 = ssub.s32 1, %s7
  %s10 = scalar_select 0, %s9, %s7
  $region1: #{tpu_custom_call.1} parent=0
    #allocation2 [shape = 'u8[8192]{0}', space=vmem, size = 0x2000, scoped, tag = 'output window, operand 0']
    #allocation3 [shape = 's32[2]{0}', space=sflag, size = 0x8, scoped, tag = 'scoped memory for tpu_custom_call.1']
    %11 = vsyncpa [#allocation3], 0
    %s12 = scalar_lea.sflag [#allocation3], 1
    %13 = vsyncpa %s12, 0
    loop: start=0, step=1, limit=6
    $region2: #{tpu_custom_call.1} parent=1 // loop_pre_header
      _
    $region3: #{tpu_custom_call.1} parent=1 // loop_header
      %s15 = sphi 0, %s19
      %p16 = scmp.ge.s32.totalorder %s15, 6
      %s23 = sphi 0, %s23
      %s25 = sphi 0, %s23
      %s26 = sphi 0, %s25
      %s40 = sphi 0, %s26
      %s44 = sphi 0, %s44
      %s46 = sphi 0, %s44
      %s47 = sphi 0, %s46
      %s61 = sphi 0, %s47
      %s67 = sphi 0, %s69
      %s70 = sphi 0, %s67
      %s71 = sphi 0, %s70
      %s87 = sphi 0, %s71
      %s93 = sphi 0, %s95
      %s96 = sphi 0, %s93
      %s97 = sphi 0, %s96
      %s113 = sphi 0, %s97
      %s119 = sphi 0, %s121
      %s122 = sphi 0, %s119
      %s123 = sphi 0, %s122
      %s139 = sphi 0, %s123
      %s145 = sphi 0, %s147
      %s148 = sphi 0, %s145
      %s149 = sphi 0, %s148
      %s165 = sphi 0, %s149
      %s171 = sphi 0, %s173
      %s174 = sphi 0, %s171
      %s175 = sphi 0, %s174
      %s191 = sphi 0, %s175
    $region4: #{tpu_custom_call.1} parent=1 // loop_header_branch
      %18 = sbr.rel (%p16) target = $region8
    $region5: #{tpu_custom_call.1} parent=1 // loop_body
      %s20 = ssub.s32 %s15, 1
      %s21 = ssub.s32 %s15, 2
      %s22 = sadd.s32 %s15, 1
      %s24 = sadd.s32 %s23, 1
      %p27 = scmp.eq.s32.totalorder %s15, 3
      %p28 = scmp.ne.s32.totalorder %s23, %s25
      %p29 = scmp.eq.s32.totalorder %s15, 0
      %p30 = por %p28, %p29
      %p31 = scmp.ne.s32.totalorder %s23, %s25
      %p32 = scmp.eq.s32.totalorder %s20, 3
      %p33 = por %p31, %p32
      %p34 = scmp.ne.s32.totalorder %s25, %s26
      %p35 = scmp.eq.s32.totalorder %s20, 0
      %p36 = por %p34, %p35
      %p37 = scmp.ne.s32.totalorder %s25, %s26
      %p38 = scmp.eq.s32.totalorder %s21, 3
      %p39 = por %p37, %p38
      %p41 = scmp.ne.s32.totalorder %s26, %s40
      %p42 = scmp.eq.s32.totalorder %s21, 0
      %p43 = por %p41, %p42
      %s45 = sadd.s32 %s44, 1
      %p48 = scmp.eq.s32.totalorder %s15, 3
      %p49 = scmp.ne.s32.totalorder %s44, %s46
      %p50 = scmp.eq.s32.totalorder %s15, 0
      %p51 = por %p49, %p50
      %p52 = scmp.ne.s32.totalorder %s44, %s46
      %p53 = scmp.eq.s32.totalorder %s20, 3
      %p54 = por %p52, %p53
      %p55 = scmp.ne.s32.totalorder %s46, %s47
      %p56 = scmp.eq.s32.totalorder %s20, 0
      %p57 = por %p55, %p56
      %p58 = scmp.ne.s32.totalorder %s46, %s47
      %p59 = scmp.eq.s32.totalorder %s21, 3
      %p60 = por %p58, %p59
      %p62 = scmp.ne.s32.totalorder %s47, %s61
      %p63 = scmp.eq.s32.totalorder %s21, 0
      %p64 = por %p62, %p63
      %s65 = ssub.s32 %s15, %s22
      %p66 = scmp.eq.s32.totalorder %s65, 0
      %s68 = sadd.s32 %s67, 1
      %s69 = scalar_select %p66, %s67, %s68
      %p72 = pneg %p66
      %p73 = scmp.eq.s32.totalorder %s15, 3
      %p74 = por %p72, %p73
      %p75 = scmp.ne.s32.totalorder %s67, %s70
      %p76 = scmp.eq.s32.totalorder %s15, 0
      %p77 = por %p75, %p76
      %p78 = scmp.ne.s32.totalorder %s67, %s70
      %p79 = scmp.eq.s32.totalorder %s20, 3
      %p80 = por %p78, %p79
      %p81 = scmp.ne.s32.totalorder %s70, %s71
      %p82 = scmp.eq.s32.totalorder %s20, 0
      %p83 = por %p81, %p82
      %p84 = scmp.ne.s32.totalorder %s70, %s71
      %p85 = scmp.eq.s32.totalorder %s21, 3
      %p86 = por %p84, %p85
      %p88 = scmp.ne.s32.totalorder %s71, %s87
      %p89 = scmp.eq.s32.totalorder %s21, 0
      %p90 = por %p88, %p89
      %s91 = ssub.s32 %s15, %s22
      %p92 = scmp.eq.s32.totalorder %s91, 0
      %s94 = sadd.s32 %s93, 1
      %s95 = scalar_select %p92, %s93, %s94
      %p98 = pneg %p92
      %p99 = scmp.eq.s32.totalorder %s15, 3
      %p100 = por %p98, %p99
      %p101 = scmp.ne.s32.totalorder %s93, %s96
      %p102 = scmp.eq.s32.totalorder %s15, 0
      %p103 = por %p101, %p102
      %p104 = scmp.ne.s32.totalorder %s93, %s96
      %p105 = scmp.eq.s32.totalorder %s20, 3
      %p106 = por %p104, %p105
      %p107 = scmp.ne.s32.totalorder %s96, %s97
      %p108 = scmp.eq.s32.totalorder %s20, 0
      %p109 = por %p107, %p108
      %p110 = scmp.ne.s32.totalorder %s96, %s97
      %p111 = scmp.eq.s32.totalorder %s21, 3
      %p112 = por %p110, %p111
      %p114 = scmp.ne.s32.totalorder %s97, %s113
      %p115 = scmp.eq.s32.totalorder %s21, 0
      %p116 = por %p114, %p115
      %s117 = ssub.s32 %s15, %s22
      %p118 = scmp.eq.s32.totalorder %s117, 0
      %s120 = sadd.s32 %s119, 1
      %s121 = scalar_select %p118, %s119, %s120
      %p124 = pneg %p118
      %p125 = scmp.eq.s32.totalorder %s15, 3
      %p126 = por %p124, %p125
      %p127 = scmp.ne.s32.totalorder %s119, %s122
      %p128 = scmp.eq.s32.totalorder %s15, 0
      %p129 = por %p127, %p128
      %p130 = scmp.ne.s32.totalorder %s119, %s122
      %p131 = scmp.eq.s32.totalorder %s20, 3
      %p132 = por %p130, %p131
      %p133 = scmp.ne.s32.totalorder %s122, %s123
      %p134 = scmp.eq.s32.totalorder %s20, 0
      %p135 = por %p133, %p134
      %p136 = scmp.ne.s32.totalorder %s122, %s123
      %p137 = scmp.eq.s32.totalorder %s21, 3
      %p138 = por %p136, %p137
      %p140 = scmp.ne.s32.totalorder %s123, %s139
      %p141 = scmp.eq.s32.totalorder %s21, 0
      %p142 = por %p140, %p141
      %s143 = ssub.s32 %s15, %s22
      %p144 = scmp.eq.s32.totalorder %s143, 0
      %s146 = sadd.s32 %s145, 1
      %s147 = scalar_select %p144, %s145, %s146
      %p150 = pneg %p144
      %p151 = scmp.eq.s32.totalorder %s15, 3
      %p152 = por %p150, %p151
      %p153 = scmp.ne.s32.totalorder %s145, %s148
      %p154 = scmp.eq.s32.totalorder %s15, 0
      %p155 = por %p153, %p154
      %p156 = scmp.ne.s32.totalorder %s145, %s148
      %p157 = scmp.eq.s32.totalorder %s20, 3
      %p158 = por %p156, %p157
      %p159 = scmp.ne.s32.totalorder %s148, %s149
      %p160 = scmp.eq.s32.totalorder %s20, 0
      %p161 = por %p159, %p160
      %p162 = scmp.ne.s32.totalorder %s148, %s149
      %p163 = scmp.eq.s32.totalorder %s21, 3
      %p164 = por %p162, %p163
      %p166 = scmp.ne.s32.totalorder %s149, %s165
      %p167 = scmp.eq.s32.totalorder %s21, 0
      %p168 = por %p166, %p167
      %s169 = ssub.s32 %s15, %s22
      %p170 = scmp.eq.s32.totalorder %s169, 0
      %s172 = sadd.s32 %s171, 1
      %s173 = scalar_select %p170, %s171, %s172
      %p176 = pneg %p170
      %p177 = scmp.eq.s32.totalorder %s15, 3
      %p178 = por %p176, %p177
      %p179 = scmp.ne.s32.totalorder %s171, %s174
      %p180 = scmp.eq.s32.totalorder %s15, 0
      %p181 = por %p179, %p180
      %p182 = scmp.ne.s32.totalorder %s171, %s174
      %p183 = scmp.eq.s32.totalorder %s20, 3
      %p184 = por %p182, %p183
      %p185 = scmp.ne.s32.totalorder %s174, %s175
      %p186 = scmp.eq.s32.totalorder %s20, 0
      %p187 = por %p185, %p186
      %p188 = scmp.ne.s32.totalorder %s174, %s175
      %p189 = scmp.eq.s32.totalorder %s21, 3
      %p190 = por %p188, %p189
      %p192 = scmp.ne.s32.totalorder %s175, %s191
      %p193 = scmp.eq.s32.totalorder %s21, 0
      %p194 = por %p192, %p193
      %p195 = scmp.le.s32.totalorder 1, %s15
      %p196 = scmp.lt.s32.totalorder %s15, 5
      %p197 = pnand %p195, %p196
      %p198 = pneg %p197
      // Predicated region
      $region9: #{tpu_custom_call.1} parent=5 // pred_check
        _
      $region10: #{tpu_custom_call.1} parent=5 // pred_check_branch
        %200 = sbr.rel (%p197) target = $region12
      $region11: #{tpu_custom_call.1} parent=5 // pred_region
        %s201 = ssub.s32 %s15, 1
        // Predicated region
        $region13: #{tpu_custom_call.1} parent=11 // pred_check
          %p202 = pneg %p36
        $region14: #{tpu_custom_call.1} parent=11 // pred_check_branch
          %204 = sbr.rel (%p202) target = $region16
        $region15: #{tpu_custom_call.1} parent=11 // pred_region
          _
        $region16: #{tpu_custom_call.1} parent=11 // pred_fallthru
          _
        // Predicated region
        $region17: #{tpu_custom_call.1} parent=11 // pred_check
          %p205 = pneg %p57
        $region18: #{tpu_custom_call.1} parent=11 // pred_check_branch
          %207 = sbr.rel (%p205) target = $region20
        $region19: #{tpu_custom_call.1} parent=11 // pred_region
          _
        $region20: #{tpu_custom_call.1} parent=11 // pred_fallthru
          _
      $region12: #{tpu_custom_call.1} parent=5 // pred_fallthru
        _
      %p208 = scmp.lt.s32.totalorder %s15, 4
      // Predicated region
      $region21: #{tpu_custom_call.1} parent=5 // pred_check
        %p209 = pneg %p208
      $region22: #{tpu_custom_call.1} parent=5 // pred_check_branch
        %211 = sbr.rel (%p209) target = $region24
      $region23: #{tpu_custom_call.1} parent=5 // pred_region
        // Predicated region
        $region25: #{tpu_custom_call.1} parent=23 // pred_check
          %p212 = pneg %p77
        $region26: #{tpu_custom_call.1} parent=23 // pred_check_branch
          %214 = sbr.rel (%p212) target = $region28
        $region27: #{tpu_custom_call.1} parent=23 // pred_region
          %p215 = scmp.lt.s32.totalorder %s15, 3
          %s216 = scalar_select %p215, %s15, 3
          %s217 = scalar_lea.vmem %s2, %s216
        $region28: #{tpu_custom_call.1} parent=23 // pred_fallthru
          _
        // Predicated region
        $region29: #{tpu_custom_call.1} parent=23 // pred_check
          %p218 = pneg %p103
        $region30: #{tpu_custom_call.1} parent=23 // pred_check_branch
          %220 = sbr.rel (%p218) target = $region32
        $region31: #{tpu_custom_call.1} parent=23 // pred_region
          %p221 = scmp.lt.s32.totalorder %s15, 3
          %s222 = scalar_select %p221, %s15, 3
          %s223 = scalar_lea.vmem %s3, %s222
        $region32: #{tpu_custom_call.1} parent=23 // pred_fallthru
          _
        // Predicated region
        $region33: #{tpu_custom_call.1} parent=23 // pred_check
          %p224 = pneg %p129
        $region34: #{tpu_custom_call.1} parent=23 // pred_check_branch
          %226 = sbr.rel (%p224) target = $region36
        $region35: #{tpu_custom_call.1} parent=23 // pred_region
          %p227 = scmp.lt.s32.totalorder %s15, 3
          %s228 = scalar_select %p227, %s15, 3
          %s229 = scalar_lea.vmem %s4, %s228
        $region36: #{tpu_custom_call.1} parent=23 // pred_fallthru
          _
        // Predicated region
        $region37: #{tpu_custom_call.1} parent=23 // pred_check
          %p230 = pneg %p155
        $region38: #{tpu_custom_call.1} parent=23 // pred_check_branch
          %232 = sbr.rel (%p230) target = $region40
        $region39: #{tpu_custom_call.1} parent=23 // pred_region
          %p233 = scmp.lt.s32.totalorder %s15, 3
          %s234 = scalar_select %p233, %s15, 3
          %s235 = scalar_lea.vmem %s5, %s234
        $region40: #{tpu_custom_call.1} parent=23 // pred_fallthru
          _
      $region24: #{tpu_custom_call.1} parent=5 // pred_fallthru
        _
      %p236 = scmp.le.s32.totalorder 1, %s15
      %p237 = scmp.lt.s32.totalorder %s15, 5
      %p238 = pnand %p236, %p237
      %p239 = pneg %p238
      // Predicated region
      $region41: #{tpu_custom_call.1} parent=5 // pred_check
        _
      $region42: #{tpu_custom_call.1} parent=5 // pred_check_branch
        %241 = sbr.rel (%p238) target = $region44
      $region43: #{tpu_custom_call.1} parent=5 // pred_region
        %s242 = ssub.s32 %s15, 1
        %p243 = pneg %p36
        %p244 = pneg %p33
        %p245 = pneg %p57
        %p246 = pneg %p54
        %p247 = scmp.lt.s32.totalorder %s20, 3
        %s248 = scalar_select %p247, %s20, 3
        %s249 = scalar_lea.vmem %s2, %s248
        %p250 = pneg %p83
        %p251 = pneg %p80
        %p252 = scmp.lt.s32.totalorder %s20, 3
        %s253 = scalar_select %p252, %s20, 3
        %s254 = scalar_lea.vmem %s3, %s253
        %p255 = pneg %p109
        %p256 = pneg %p106
        %p257 = scmp.lt.s32.totalorder %s20, 3
        %s258 = scalar_select %p257, %s20, 3
        %s259 = scalar_lea.vmem %s4, %s258
        %p260 = pneg %p135
        %p261 = pneg %p132
        %p262 = scmp.lt.s32.totalorder %s20, 3
        %s263 = scalar_select %p262, %s20, 3
        %s264 = scalar_lea.vmem %s5, %s263
        %p265 = pneg %p161
        %p266 = pneg %p158
        %p267 = pneg %p187
        %p268 = pneg %p184
        %s269 = sand.u32 %s174, 1
        %s270 = scalar_lea.sflag [#allocation3], %s269
        %s271 = sand.u32 %s174, 1
        %s272 = smul.addr %s271, 8
        %s273 = scalar_lea.vmem [#allocation2], %s272
        %p274 = scmp.lt.s32.totalorder %s20, 3
        %s275 = scalar_select %p274, %s20, 3
        %s276 = scalar_lea.vmem %s2, %s275
        %p277 = scmp.lt.s32.totalorder %s20, 3
        %s278 = scalar_select %p277, %s20, 3
        %s279 = scalar_lea.vmem %s3, %s278
        %p280 = scmp.lt.s32.totalorder %s20, 3
        %s281 = scalar_select %p280, %s20, 3
        %s282 = scalar_lea.vmem %s4, %s281
        %p283 = scmp.lt.s32.totalorder %s20, 3
        %s284 = scalar_select %p283, %s20, 3
        %s285 = scalar_lea.vmem %s5, %s284
        %v286 = vld [vmem:[%s0] sm:$0xff]
        %v287 = vld [vmem:[%s0 + $0x8] sm:$0xff]
        %v288 = vld [vmem:[%s0 + $0x10] sm:$0xff]
        %v289 = vld [vmem:[%s0 + $0x18] sm:$0xff]
        %v290 = vld [vmem:[%s1] sm:$0xff]
        %v291 = vld [vmem:[%s1 + $0x8] sm:$0xff]
        %v292 = vld [vmem:[%s1 + $0x10] sm:$0xff]
        %v293 = vld [vmem:[%s1 + $0x18] sm:$0xff]
        %v294 = vld [vmem:[%s276] sm:$0x1]
        %v295 = vlaneseq
        %v296 = vshrl.u32 %v295, 7
        %v297 = vadd.s32 %v296, 8
        %v298 = vadd.s32 %v296, 16
        %v299 = vadd.s32 %v296, 24
        %v300 = vadd.s32 %v296, 32
        %v301 = vadd.s32 %v296, 40
        %v302 = vadd.s32 %v296, 48
        %v303 = vlaneseq
        %v304 = vshrl.u32 %v303, 7
        %v305 = vsub.s32 0, %v304
        %v306 = vrot.slane %v294, %v305
        %vm307 = vcmp.eq.s32.totalorder %v296, %v306
        %vm308 = vcmp.eq.s32.totalorder %v297, %v306
        %vm309 = vcmp.eq.s32.totalorder %v298, %v306
        %vm310 = vcmp.eq.s32.totalorder %v299, %v306
        %vm311 = vcmp.eq.s32.totalorder %v300, %v306
        %vm312 = vcmp.eq.s32.totalorder %v301, %v306
        %vm313 = vcmp.eq.s32.totalorder %v302, %v306
        %v314 = vsel %vm307, 1, 0
        %v315 = vsel %vm308, 1, 0
        %v316 = vsel %vm309, 1, 0
        %v317 = vsel %vm310, 1, 0
        %v318 = vsel %vm311, 1, 0
        %v319 = vsel %vm312, 1, 0
        %v320 = vsel %vm313, 1, 0
        %v321 = vcvt.s32.f32 %v314
        %v322 = vcvt.s32.f32 %v315
        %v323 = vcvt.s32.f32 %v316
        %v324 = vcvt.s32.f32 %v317
        %v325 = vcvt.s32.f32 %v318
        %v326 = vcvt.s32.f32 %v319
        %v327 = vcvt.s32.f32 %v320
        %vm328 = vcmask 408576
        %v330 = vsel %vm328, %v286, 0
        %v333 = vsel %vm328, %v287, 0
        %v336 = vsel %vm328, %v288, 0
        %v339 = vsel %vm328, %v289, 0
        %vm341 = vcmask 1041408
        %v343 = vsel %vm341, %v327, 0
        %345 = vmatprep.subr.mxu0 0.0
        %v346 = vand.u32 %v321, 4294901760
        %347 = vmatpush1.msra.mxu0 %v346
        %348 = vmatprep.subr.mxu0 0.0
        %v349 = vand.u32 %v322, 4294901760
        %350 = vmatpush1.msra.mxu0 %v349
        %351 = vmatprep.subr.mxu0 0.0
        %v352 = vand.u32 %v323, 4294901760
        %353 = vmatpush1.msra.mxu0 %v352
        %354 = vmatprep.subr.mxu0 0.0
        %v355 = vand.u32 %v324, 4294901760
        %356 = vmatpush1.msra.mxu0 %v355
        %357 = vmatprep.subr.mxu0 0.0
        %v358 = vand.u32 %v325, 4294901760
        %359 = vmatpush1.msra.mxu0 %v358
        %360 = vmatprep.subr.mxu0 0.0
        %v361 = vand.u32 %v326, 4294901760
        %362 = vmatpush1.msra.mxu0 %v361
        %363 = vmatprep.subr.mxu0 0.0
        %v364 = vand.u32 %v343, 4294901760
        %365 = vmatpush1.msra.mxu0 %v364
        %366 = vmatprep.subr.mxu0 0.0
        %367 = vmatpush1.msra.mxu0 0.0
        %368 = vmatprep.subr.mxu0 0.0
        %369 = vmatpush1.msra.mxu0 0.0
        %370 = vmatprep.subr.mxu0 0.0
        %371 = vmatpush1.msra.mxu0 0.0
        %372 = vmatprep.subr.mxu0 0.0
        %373 = vmatpush1.msra.mxu0 0.0
        %374 = vmatprep.subr.mxu0 0.0
        %375 = vmatpush1.msra.mxu0 0.0
        %376 = vmatprep.subr.mxu0 0.0
        %377 = vmatpush1.msra.mxu0 0.0
        %378 = vmatprep.subr.mxu0 0.0
        %379 = vmatpush1.msra.mxu0 0.0
        %380 = vmatprep.subr.mxu0 0.0
        %381 = vmatpush1.msra.mxu0 0.0
        %382 = vmatprep.subr.mxu0 0.0
        %383 = vmatpush1.msra.mxu0 0.0
        %384 = vmatprep.subr.mxu0 0.0
        %385 = vmatpush1.msra.mxu0 0.0
        %386 = vmatprep.subr.mxu0 0.0
        %387 = vmatpush1.msra.mxu0 0.0
        %388 = vmatprep.subr.mxu0 0.0
        %389 = vmatpush1.msra.mxu0 0.0
        %390 = vmatprep.subr.mxu0 0.0
        %391 = vmatpush1.msra.mxu0 0.0
        %392 = vmatprep.subr.mxu0 0.0
        %393 = vmatpush1.msra.mxu0 0.0
        %394 = vmatprep.subr.mxu0 0.0
        %395 = vmatpush1.msra.mxu0 0.0
        %396 = vmatprep.subr.mxu0 0.0
        %397 = vmatpush1.msra.mxu0 0.0
        %398 = vmatprep.subr.mxu0 0.0
        %399 = vmatpush1.msra.mxu0 0.0
        %400 = vmatprep.subr.mxu0 0.0
        %401 = vmatpush1.msra.mxu0 0.0
        %402 = vmatprep.subr.mxu0 0.0
        %403 = vmatpush1.msra.mxu0 0.0
        %404 = vmatprep.subr.mxu0 0.0
        %405 = vmatpush1.msra.mxu0 0.0
        %406 = vmatprep.subr.mxu0 0.0
        %407 = vmatpush1.msra.mxu0 0.0
        %408 = vmatprep.subr.mxu0 0.0
        %409 = vmatpush1.msra.mxu0 0.0
        %410 = vmatprep.subr.mxu0 0.0
        %411 = vmatpush1.msra.mxu0 0.0
        %412 = vmatprep.subr.mxu0 0.0
        %413 = vmatpush1.msra.mxu0 0.0
        %414 = vmatprep.subr.mxu0 0.0
        %415 = vmatpush1.msra.mxu0 0.0
        %416 = vmatprep.mubr.f32.mxu0 0.0
        %v417 = vand.u32 %v330, 4294901760
        %v418 = vsub.f32 %v330, %v417
        %v419 = vand.u32 %v418, 4294901760
        %v420 = vsub.f32 %v418, %v419
        %v421 = vand.u32 %v420, 4294901760
        %422 = vmatmul.mubr.f32.gmra.mrb[0].mxu0 %v421
        %v423 = vpop.f32.mrb[0].mxu0
        %v424 = vadd.f32 0.0, %v423
        %v425 = vpop.f32.mrb[0].mxu0
        %426 = vmatprep.mubr.f32.mxu0 0.0
        %v427 = vand.u32 %v333, 4294901760
        %v428 = vsub.f32 %v333, %v427
        %v429 = vand.u32 %v428, 4294901760
        %v430 = vsub.f32 %v428, %v429
        %v431 = vand.u32 %v430, 4294901760
        %432 = vmatmul.mubr.f32.gmra.mrb[0].mxu0 %v431
        %v433 = vpop.f32.mrb[0].mxu0
        %v434 = vadd.f32 0.0, %v433
        %v435 = vpop.f32.mrb[0].mxu0
        %436 = vmatprep.mubr.f32.mxu0 0.0
        %v437 = vand.u32 %v336, 4294901760
        %v438 = vsub.f32 %v336, %v437
        %v439 = vand.u32 %v438, 4294901760
        %v440 = vsub.f32 %v438, %v439
        %v441 = vand.u32 %v440, 4294901760
        %442 = vmatmul.mubr.f32.gmra.mrb[0].mxu0 %v441
        %v443 = vpop.f32.mrb[0].mxu0
        %v444 = vadd.f32 0.0, %v443
        %v445 = vpop.f32.mrb[0].mxu0
        %446 = vmatprep.mubr.f32.mxu0 0.0
        %v447 = vand.u32 %v339, 4294901760
        %v448 = vsub.f32 %v339, %v447
        %v449 = vand.u32 %v448, 4294901760
        %v450 = vsub.f32 %v448, %v449
        %v451 = vand.u32 %v450, 4294901760
        %452 = vmatmul.mubr.f32.gmra.mrb[0].mxu0 %v451
        %v453 = vpop.f32.mrb[0].mxu0
        %v454 = vadd.f32 0.0, %v453
        %v455 = vpop.f32.mrb[0].mxu0
        %456 = vdwg.mxu0
        %457 = vmatprep.subr.mxu0 0.0
        %v458 = vand.u32 %v321, 4294901760
        %v459 = vsub.f32 %v321, %v458
        %v460 = vand.u32 %v459, 4294901760
        %v461 = vsub.f32 %v459, %v460
        %v462 = vand.u32 %v461, 4294901760
        %463 = vmatpush1.msra.mxu0 %v462
        %464 = vmatprep.subr.mxu0 0.0
        %v465 = vand.u32 %v322, 4294901760
        %v466 = vsub.f32 %v322, %v465
        %v467 = vand.u32 %v466, 4294901760
        %v468 = vsub.f32 %v466, %v467
        %v469 = vand.u32 %v468, 4294901760
        %470 = vmatpush1.msra.mxu0 %v469
        %471 = vmatprep.subr.mxu0 0.0
        %v472 = vand.u32 %v323, 4294901760
        %v473 = vsub.f32 %v323, %v472
        %v474 = vand.u32 %v473, 4294901760
        %v475 = vsub.f32 %v473, %v474
        %v476 = vand.u32 %v475, 4294901760
        %477 = vmatpush1.msra.mxu0 %v476
        %478 = vmatprep.subr.mxu0 0.0
        %v479 = vand.u32 %v324, 4294901760
        %v480 = vsub.f32 %v324, %v479
        %v481 = vand.u32 %v480, 4294901760
        %v482 = vsub.f32 %v480, %v481
        %v483 = vand.u32 %v482, 4294901760
        %484 = vmatpush1.msra.mxu0 %v483
        %485 = vmatprep.subr.mxu0 0.0
        %v486 = vand.u32 %v325, 4294901760
        %v487 = vsub.f32 %v325, %v486
        %v488 = vand.u32 %v487, 4294901760
        %v489 = vsub.f32 %v487, %v488
        %v490 = vand.u32 %v489, 4294901760
        %491 = vmatpush1.msra.mxu0 %v490
        %492 = vmatprep.subr.mxu0 0.0
        %v493 = vand.u32 %v326, 4294901760
        %v494 = vsub.f32 %v326, %v493
        %v495 = vand.u32 %v494, 4294901760
        %v496 = vsub.f32 %v494, %v495
        %v497 = vand.u32 %v496, 4294901760
        %498 = vmatpush1.msra.mxu0 %v497
        %499 = vmatprep.subr.mxu0 0.0
        %v500 = vand.u32 %v343, 4294901760
        %v501 = vsub.f32 %v343, %v500
        %v502 = vand.u32 %v501, 4294901760
        %v503 = vsub.f32 %v501, %v502
        %v504 = vand.u32 %v503, 4294901760
        %505 = vmatpush1.msra.mxu0 %v504
        %506 = vmatprep.subr.mxu0 0.0
        %507 = vmatpush1.msra.mxu0 0.0
        %508 = vmatprep.subr.mxu0 0.0
        %509 = vmatpush1.msra.mxu0 0.0
        %510 = vmatprep.subr.mxu0 0.0
        %511 = vmatpush1.msra.mxu0 0.0
        %512 = vmatprep.subr.mxu0 0.0
        %513 = vmatpush1.msra.mxu0 0.0
        %514 = vmatprep.subr.mxu0 0.0
        %515 = vmatpush1.msra.mxu0 0.0
        %516 = vmatprep.subr.mxu0 0.0
        %517 = vmatpush1.msra.mxu0 0.0
        %518 = vmatprep.subr.mxu0 0.0
        %519 = vmatpush1.msra.mxu0 0.0
        %520 = vmatprep.subr.mxu0 0.0
        %521 = vmatpush1.msra.mxu0 0.0
        %522 = vmatprep.subr.mxu0 0.0
        %523 = vmatpush1.msra.mxu0 0.0
        %524 = vmatprep.subr.mxu0 0.0
        %525 = vmatpush1.msra.mxu0 0.0
        %526 = vmatprep.subr.mxu0 0.0
        %527 = vmatpush1.msra.mxu0 0.0
        %528 = vmatprep.subr.mxu0 0.0
        %529 = vmatpush1.msra.mxu0 0.0
        %530 = vmatprep.subr.mxu0 0.0
        %531 = vmatpush1.msra.mxu0 0.0
        %532 = vmatprep.subr.mxu0 0.0
        %533 = vmatpush1.msra.mxu0 0.0
        %534 = vmatprep.subr.mxu0 0.0
        %535 = vmatpush1.msra.mxu0 0.0
        %536 = vmatprep.subr.mxu0 0.0
        %537 = vmatpush1.msra.mxu0 0.0
        %538 = vmatprep.subr.mxu0 0.0
        %539 = vmatpush1.msra.mxu0 0.0
        %540 = vmatprep.subr.mxu0 0.0
        %541 = vmatpush1.msra.mxu0 0.0
        %542 = vmatprep.subr.mxu0 0.0
        %543 = vmatpush1.msra.mxu0 0.0
        %544 = vmatprep.subr.mxu0 0.0
        %545 = vmatpush1.msra.mxu0 0.0
        %546 = vmatprep.subr.mxu0 0.0
        %547 = vmatpush1.msra.mxu0 0.0
        %548 = vmatprep.subr.mxu0 0.0
        %549 = vmatpush1.msra.mxu0 0.0
        %550 = vmatprep.subr.mxu0 0.0
        %551 = vmatpush1.msra.mxu0 0.0
        %552 = vmatprep.subr.mxu0 0.0
        %553 = vmatpush1.msra.mxu0 0.0
        %554 = vmatprep.subr.mxu0 0.0
        %555 = vmatpush1.msra.mxu0 0.0
        %556 = vmatprep.mubr.f32.mxu0 0.0
        %v557 = vand.u32 %v330, 4294901760
        %558 = vmatmul.mubr.f32.gmra.mrb[0].mxu0 %v557
        %v559 = vpop.f32.mrb[0].mxu0
        %v560 = vadd.f32 %v424, %v559
        %v561 = vpop.f32.mrb[0].mxu0
        %562 = vmatprep.mubr.f32.mxu0 0.0
        %v563 = vand.u32 %v333, 4294901760
        %564 = vmatmul.mubr.f32.gmra.mrb[0].mxu0 %v563
        %v565 = vpop.f32.mrb[0].mxu0
        %v566 = vadd.f32 %v434, %v565
        %v567 = vpop.f32.mrb[0].mxu0
        %568 = vmatprep.mubr.f32.mxu0 0.0
        %v569 = vand.u32 %v336, 4294901760
        %570 = vmatmul.mubr.f32.gmra.mrb[0].mxu0 %v569
        %v571 = vpop.f32.mrb[0].mxu0
        %v572 = vadd.f32 %v444, %v571
        %v573 = vpop.f32.mrb[0].mxu0
        %574 = vmatprep.mubr.f32.mxu0 0.0
        %v575 = vand.u32 %v339, 4294901760
        %576 = vmatmul.mubr.f32.gmra.mrb[0].mxu0 %v575
        %v577 = vpop.f32.mrb[0].mxu0
        %v578 = vadd.f32 %v454, %v577
        %v579 = vpop.f32.mrb[0].mxu0
        %580 = vdwg.mxu0
        %581 = vmatprep.subr.mxu0 0.0
        %v582 = vand.u32 %v321, 4294901760
        %v583 = vsub.f32 %v321, %v582
        %584 = vmatpush1.msra.mxu0 %v583
        %585 = vmatprep.subr.mxu0 0.0
        %v586 = vand.u32 %v322, 4294901760
        %v587 = vsub.f32 %v322, %v586
        %588 = vmatpush1.msra.mxu0 %v587
        %589 = vmatprep.subr.mxu0 0.0
        %v590 = vand.u32 %v323, 4294901760
        %v591 = vsub.f32 %v323, %v590
        %592 = vmatpush1.msra.mxu0 %v591
        %593 = vmatprep.subr.mxu0 0.0
        %v594 = vand.u32 %v324, 4294901760
        %v595 = vsub.f32 %v324, %v594
        %596 = vmatpush1.msra.mxu0 %v595
        %597 = vmatprep.subr.mxu0 0.0
        %v598 = vand.u32 %v325, 4294901760
        %v599 = vsub.f32 %v325, %v598
        %600 = vmatpush1.msra.mxu0 %v599
        %601 = vmatprep.subr.mxu0 0.0
        %v602 = vand.u32 %v326, 4294901760
        %v603 = vsub.f32 %v326, %v602
        %604 = vmatpush1.msra.mxu0 %v603
        %605 = vmatprep.subr.mxu0 0.0
        %v606 = vand.u32 %v343, 4294901760
        %v607 = vsub.f32 %v343, %v606
        %608 = vmatpush1.msra.mxu0 %v607
        %609 = vmatprep.subr.mxu0 0.0
        %610 = vmatpush1.msra.mxu0 0.0
        %611 = vmatprep.subr.mxu0 0.0
        %612 = vmatpush1.msra.mxu0 0.0
        %613 = vmatprep.subr.mxu0 0.0
        %614 = vmatpush1.msra.mxu0 0.0
        %615 = vmatprep.subr.mxu0 0.0
        %616 = vmatpush1.msra.mxu0 0.0
        %617 = vmatprep.subr.mxu0 0.0
        %618 = vmatpush1.msra.mxu0 0.0
        %619 = vmatprep.subr.mxu0 0.0
        %620 = vmatpush1.msra.mxu0 0.0
        %621 = vmatprep.subr.mxu0 0.0
        %622 = vmatpush1.msra.mxu0 0.0
        %623 = vmatprep.subr.mxu0 0.0
        %624 = vmatpush1.msra.mxu0 0.0
        %625 = vmatprep.subr.mxu0 0.0
        %626 = vmatpush1.msra.mxu0 0.0
        %627 = vmatprep.subr.mxu0 0.0
        %628 = vmatpush1.msra.mxu0 0.0
        %629 = vmatprep.subr.mxu0 0.0
        %630 = vmatpush1.msra.mxu0 0.0
        %631 = vmatprep.subr.mxu0 0.0
        %632 = vmatpush1.msra.mxu0 0.0
        %633 = vmatprep.subr.mxu0 0.0
        %634 = vmatpush1.msra.mxu0 0.0
        %635 = vmatprep.subr.mxu0 0.0
        %636 = vmatpush1.msra.mxu0 0.0
        %637 = vmatprep.subr.mxu0 0.0
        %638 = vmatpush1.msra.mxu0 0.0
        %639 = vmatprep.subr.mxu0 0.0
        %640 = vmatpush1.msra.mxu0 0.0
        %641 = vmatprep.subr.mxu0 0.0
        %642 = vmatpush1.msra.mxu0 0.0
        %643 = vmatprep.subr.mxu0 0.0
        %644 = vmatpush1.msra.mxu0 0.0
        %645 = vmatprep.subr.mxu0 0.0
        %646 = vmatpush1.msra.mxu0 0.0
        %647 = vmatprep.subr.mxu0 0.0
        %648 = vmatpush1.msra.mxu0 0.0
        %649 = vmatprep.subr.mxu0 0.0
        %650 = vmatpush1.msra.mxu0 0.0
        %651 = vmatprep.subr.mxu0 0.0
        %652 = vmatpush1.msra.mxu0 0.0
        %653 = vmatprep.subr.mxu0 0.0
        %654 = vmatpush1.msra.mxu0 0.0
        %655 = vmatprep.subr.mxu0 0.0
        %656 = vmatpush1.msra.mxu0 0.0
        %657 = vmatprep.subr.mxu0 0.0
        %658 = vmatpush1.msra.mxu0 0.0
        %659 = vmatprep.mubr.f32.mxu0 0.0
        %v660 = vand.u32 %v330, 4294901760
        %v661 = vsub.f32 %v330, %v660
        %662 = vmatmul.mubr.f32.gmra.mrb[0].mxu0 %v661
        %v663 = vpop.f32.mrb[0].mxu0
        %v664 = vadd.f32 %v560, %v663
        %v665 = vpop.f32.mrb[0].mxu0
        %666 = vmatprep.mubr.f32.mxu0 0.0
        %v667 = vand.u32 %v333, 4294901760
        %v668 = vsub.f32 %v333, %v667
        %669 = vmatmul.mubr.f32.gmra.mrb[0].mxu0 %v668
        %v670 = vpop.f32.mrb[0].mxu0
        %v671 = vadd.f32 %v566, %v670
        %v672 = vpop.f32.mrb[0].mxu0
        %673 = vmatprep.mubr.f32.mxu0 0.0
        %v674 = vand.u32 %v336, 4294901760
        %v675 = vsub.f32 %v336, %v674
        %676 = vmatmul.mubr.f32.gmra.mrb[0].mxu0 %v675
        %v677 = vpop.f32.mrb[0].mxu0
        %v678 = vadd.f32 %v572, %v677
        %v679 = vpop.f32.mrb[0].mxu0
        %680 = vmatprep.mubr.f32.mxu0 0.0
        %v681 = vand.u32 %v339, 4294901760
        %v682 = vsub.f32 %v339, %v681
        %683 = vmatmul.mubr.f32.gmra.mrb[0].mxu0 %v682
        %v684 = vpop.f32.mrb[0].mxu0
        %v685 = vadd.f32 %v578, %v684
        %v686 = vpop.f32.mrb[0].mxu0
        %687 = vdwg.mxu0
        %688 = vmatprep.subr.mxu0 0.0
        %v689 = vand.u32 %v321, 4294901760
        %690 = vmatpush1.msra.mxu0 %v689
        %691 = vmatprep.subr.mxu0 0.0
        %v692 = vand.u32 %v322, 4294901760
        %693 = vmatpush1.msra.mxu0 %v692
        %694 = vmatprep.subr.mxu0 0.0
        %v695 = vand.u32 %v323, 4294901760
        %696 = vmatpush1.msra.mxu0 %v695
        %697 = vmatprep.subr.mxu0 0.0
        %v698 = vand.u32 %v324, 4294901760
        %699 = vmatpush1.msra.mxu0 %v698
        %700 = vmatprep.subr.mxu0 0.0
        %v701 = vand.u32 %v325, 4294901760
        %702 = vmatpush1.msra.mxu0 %v701
        %703 = vmatprep.subr.mxu0 0.0
        %v704 = vand.u32 %v326, 4294901760
        %705 = vmatpush1.msra.mxu0 %v704
        %706 = vmatprep.subr.mxu0 0.0
        %v707 = vand.u32 %v343, 4294901760
        %708 = vmatpush1.msra.mxu0 %v707
        %709 = vmatprep.subr.mxu0 0.0
        %710 = vmatpush1.msra.mxu0 0.0
        %711 = vmatprep.subr.mxu0 0.0
        %712 = vmatpush1.msra.mxu0 0.0
        %713 = vmatprep.subr.mxu0 0.0
        %714 = vmatpush1.msra.mxu0 0.0
        %715 = vmatprep.subr.mxu0 0.0
        %716 = vmatpush1.msra.mxu0 0.0
        %717 = vmatprep.subr.mxu0 0.0
        %718 = vmatpush1.msra.mxu0 0.0
        %719 = vmatprep.subr.mxu0 0.0
        %720 = vmatpush1.msra.mxu0 0.0
        %721 = vmatprep.subr.mxu0 0.0
        %722 = vmatpush1.msra.mxu0 0.0
        %723 = vmatprep.subr.mxu0 0.0
        %724 = vmatpush1.msra.mxu0 0.0
        %725 = vmatprep.subr.mxu0 0.0
        %726 = vmatpush1.msra.mxu0 0.0
        %727 = vmatprep.subr.mxu0 0.0
        %728 = vmatpush1.msra.mxu0 0.0
        %729 = vmatprep.subr.mxu0 0.0
        %730 = vmatpush1.msra.mxu0 0.0
        %731 = vmatprep.subr.mxu0 0.0
        %732 = vmatpush1.msra.mxu0 0.0
        %733 = vmatprep.subr.mxu0 0.0
        %734 = vmatpush1.msra.mxu0 0.0
        %735 = vmatprep.subr.mxu0 0.0
        %736 = vmatpush1.msra.mxu0 0.0
        %737 = vmatprep.subr.mxu0 0.0
        %738 = vmatpush1.msra.mxu0 0.0
        %739 = vmatprep.subr.mxu0 0.0
        %740 = vmatpush1.msra.mxu0 0.0
        %741 = vmatprep.subr.mxu0 0.0
        %742 = vmatpush1.msra.mxu0 0.0
        %743 = vmatprep.subr.mxu0 0.0
        %744 = vmatpush1.msra.mxu0 0.0
        %745 = vmatprep.subr.mxu0 0.0
        %746 = vmatpush1.msra.mxu0 0.0
        %747 = vmatprep.subr.mxu0 0.0
        %748 = vmatpush1.msra.mxu0 0.0
        %749 = vmatprep.subr.mxu0 0.0
        %750 = vmatpush1.msra.mxu0 0.0
        %751 = vmatprep.subr.mxu0 0.0
        %752 = vmatpush1.msra.mxu0 0.0
        %753 = vmatprep.subr.mxu0 0.0
        %754 = vmatpush1.msra.mxu0 0.0
        %755 = vmatprep.subr.mxu0 0.0
        %756 = vmatpush1.msra.mxu0 0.0
        %757 = vmatprep.subr.mxu0 0.0
        %758 = vmatpush1.msra.mxu0 0.0
        %759 = vmatprep.mubr.f32.mxu0 0.0
        %v760 = vand.u32 %v330, 4294901760
        %v761 = vsub.f32 %v330, %v760
        %v762 = vand.u32 %v761, 4294901760
        %763 = vmatmul.mubr.f32.gmra.mrb[0].mxu0 %v762
        %v764 = vpop.f32.mrb[0].mxu0
        %v765 = vadd.f32 %v664, %v764
        %v766 = vpop.f32.mrb[0].mxu0
        %767 = vmatprep.mubr.f32.mxu0 0.0
        %v768 = vand.u32 %v333, 4294901760
        %v769 = vsub.f32 %v333, %v768
        %v770 = vand.u32 %v769, 4294901760
        %771 = vmatmul.mubr.f32.gmra.mrb[0].mxu0 %v770
        %v772 = vpop.f32.mrb[0].mxu0
        %v773 = vadd.f32 %v671, %v772
        %v774 = vpop.f32.mrb[0].mxu0
        %775 = vmatprep.mubr.f32.mxu0 0.0
        %v776 = vand.u32 %v336, 4294901760
        %v777 = vsub.f32 %v336, %v776
        %v778 = vand.u32 %v777, 4294901760
        %779 = vmatmul.mubr.f32.gmra.mrb[0].mxu0 %v778
        %v780 = vpop.f32.mrb[0].mxu0
        %v781 = vadd.f32 %v678, %v780
        %v782 = vpop.f32.mrb[0].mxu0
        %783 = vmatprep.mubr.f32.mxu0 0.0
        %v784 = vand.u32 %v339, 4294901760
        %v785 = vsub.f32 %v339, %v784
        %v786 = vand.u32 %v785, 4294901760
        %787 = vmatmul.mubr.f32.gmra.mrb[0].mxu0 %v786
        %v788 = vpop.f32.mrb[0].mxu0
        %v789 = vadd.f32 %v685, %v788
        %v790 = vpop.f32.mrb[0].mxu0
        %791 = vdwg.mxu0
        %792 = vmatprep.subr.mxu0 0.0
        %v793 = vand.u32 %v321, 4294901760
        %v794 = vsub.f32 %v321, %v793
        %v795 = vand.u32 %v794, 4294901760
        %796 = vmatpush1.msra.mxu0 %v795
        %797 = vmatprep.subr.mxu0 0.0
        %v798 = vand.u32 %v322, 4294901760
        %v799 = vsub.f32 %v322, %v798
        %v800 = vand.u32 %v799, 4294901760
        %801 = vmatpush1.msra.mxu0 %v800
        %802 = vmatprep.subr.mxu0 0.0
        %v803 = vand.u32 %v323, 4294901760
        %v804 = vsub.f32 %v323, %v803
        %v805 = vand.u32 %v804, 4294901760
        %806 = vmatpush1.msra.mxu0 %v805
        %807 = vmatprep.subr.mxu0 0.0
        %v808 = vand.u32 %v324, 4294901760
        %v809 = vsub.f32 %v324, %v808
        %v810 = vand.u32 %v809, 4294901760
        %811 = vmatpush1.msra.mxu0 %v810
        %812 = vmatprep.subr.mxu0 0.0
        %v813 = vand.u32 %v325, 4294901760
        %v814 = vsub.f32 %v325, %v813
        %v815 = vand.u32 %v814, 4294901760
        %816 = vmatpush1.msra.mxu0 %v815
        %817 = vmatprep.subr.mxu0 0.0
        %v818 = vand.u32 %v326, 4294901760
        %v819 = vsub.f32 %v326, %v818
        %v820 = vand.u32 %v819, 4294901760
        %821 = vmatpush1.msra.mxu0 %v820
        %822 = vmatprep.subr.mxu0 0.0
        %v823 = vand.u32 %v343, 4294901760
        %v824 = vsub.f32 %v343, %v823
        %v825 = vand.u32 %v824, 4294901760
        %826 = vmatpush1.msra.mxu0 %v825
        %827 = vmatprep.subr.mxu0 0.0
        %828 = vmatpush1.msra.mxu0 0.0
        %829 = vmatprep.subr.mxu0 0.0
        %830 = vmatpush1.msra.mxu0 0.0
        %831 = vmatprep.subr.mxu0 0.0
        %832 = vmatpush1.msra.mxu0 0.0
        %833 = vmatprep.subr.mxu0 0.0
        %834 = vmatpush1.msra.mxu0 0.0
        %835 = vmatprep.subr.mxu0 0.0
        %836 = vmatpush1.msra.mxu0 0.0
        %837 = vmatprep.subr.mxu0 0.0
        %838 = vmatpush1.msra.mxu0 0.0
        %839 = vmatprep.subr.mxu0 0.0
        %840 = vmatpush1.msra.mxu0 0.0
        %841 = vmatprep.subr.mxu0 0.0
        %842 = vmatpush1.msra.mxu0 0.0
        %843 = vmatprep.subr.mxu0 0.0
        %844 = vmatpush1.msra.mxu0 0.0
        %845 = vmatprep.subr.mxu0 0.0
        %846 = vmatpush1.msra.mxu0 0.0
        %847 = vmatprep.subr.mxu0 0.0
        %848 = vmatpush1.msra.mxu0 0.0
        %849 = vmatprep.subr.mxu0 0.0
        %850 = vmatpush1.msra.mxu0 0.0
        %851 = vmatprep.subr.mxu0 0.0
        %852 = vmatpush1.msra.mxu0 0.0
        %853 = vmatprep.subr.mxu0 0.0
        %854 = vmatpush1.msra.mxu0 0.0
        %855 = vmatprep.subr.mxu0 0.0
        %856 = vmatpush1.msra.mxu0 0.0
        %857 = vmatprep.subr.mxu0 0.0
        %858 = vmatpush1.msra.mxu0 0.0
        %859 = vmatprep.subr.mxu0 0.0
        %860 = vmatpush1.msra.mxu0 0.0
        %861 = vmatprep.subr.mxu0 0.0
        %862 = vmatpush1.msra.mxu0 0.0
        %863 = vmatprep.subr.mxu0 0.0
        %864 = vmatpush1.msra.mxu0 0.0
        %865 = vmatprep.subr.mxu0 0.0
        %866 = vmatpush1.msra.mxu0 0.0
        %867 = vmatprep.subr.mxu0 0.0
        %868 = vmatpush1.msra.mxu0 0.0
        %869 = vmatprep.subr.mxu0 0.0
        %870 = vmatpush1.msra.mxu0 0.0
        %871 = vmatprep.subr.mxu0 0.0
        %872 = vmatpush1.msra.mxu0 0.0
        %873 = vmatprep.subr.mxu0 0.0
        %874 = vmatpush1.msra.mxu0 0.0
        %875 = vmatprep.subr.mxu0 0.0
        %876 = vmatpush1.msra.mxu0 0.0
        %877 = vmatprep.mubr.f32.mxu0 0.0
        %v878 = vand.u32 %v330, 4294901760
        %879 = vmatmul.mubr.f32.gmra.mrb[0].mxu0 %v878
        %v880 = vpop.f32.mrb[0].mxu0
        %v881 = vadd.f32 %v765, %v880
        %v882 = vpop.f32.mrb[0].mxu0
        %883 = vmatprep.mubr.f32.mxu0 0.0
        %v884 = vand.u32 %v333, 4294901760
        %885 = vmatmul.mubr.f32.gmra.mrb[0].mxu0 %v884
        %v886 = vpop.f32.mrb[0].mxu0
        %v887 = vadd.f32 %v773, %v886
        %v888 = vpop.f32.mrb[0].mxu0
        %889 = vmatprep.mubr.f32.mxu0 0.0
        %v890 = vand.u32 %v336, 4294901760
        %891 = vmatmul.mubr.f32.gmra.mrb[0].mxu0 %v890
        %v892 = vpop.f32.mrb[0].mxu0
        %v893 = vadd.f32 %v781, %v892
        %v894 = vpop.f32.mrb[0].mxu0
        %895 = vmatprep.mubr.f32.mxu0 0.0
        %v896 = vand.u32 %v339, 4294901760
        %897 = vmatmul.mubr.f32.gmra.mrb[0].mxu0 %v896
        %v898 = vpop.f32.mrb[0].mxu0
        %v899 = vadd.f32 %v789, %v898
        %v900 = vpop.f32.mrb[0].mxu0
        %901 = vdwg.mxu0
        %902 = vmatprep.subr.mxu0 0.0
        %v903 = vand.u32 %v321, 4294901760
        %904 = vmatpush1.msra.mxu0 %v903
        %905 = vmatprep.subr.mxu0 0.0
        %v906 = vand.u32 %v322, 4294901760
        %907 = vmatpush1.msra.mxu0 %v906
        %908 = vmatprep.subr.mxu0 0.0
        %v909 = vand.u32 %v323, 4294901760
        %910 = vmatpush1.msra.mxu0 %v909
        %911 = vmatprep.subr.mxu0 0.0
        %v912 = vand.u32 %v324, 4294901760
        %913 = vmatpush1.msra.mxu0 %v912
        %914 = vmatprep.subr.mxu0 0.0
        %v915 = vand.u32 %v325, 4294901760
        %916 = vmatpush1.msra.mxu0 %v915
        %917 = vmatprep.subr.mxu0 0.0
        %v918 = vand.u32 %v326, 4294901760
        %919 = vmatpush1.msra.mxu0 %v918
        %920 = vmatprep.subr.mxu0 0.0
        %v921 = vand.u32 %v343, 4294901760
        %922 = vmatpush1.msra.mxu0 %v921
        %923 = vmatprep.subr.mxu0 0.0
        %924 = vmatpush1.msra.mxu0 0.0
        %925 = vmatprep.subr.mxu0 0.0
        %926 = vmatpush1.msra.mxu0 0.0
        %927 = vmatprep.subr.mxu0 0.0
        %928 = vmatpush1.msra.mxu0 0.0
        %929 = vmatprep.subr.mxu0 0.0
        %930 = vmatpush1.msra.mxu0 0.0
        %931 = vmatprep.subr.mxu0 0.0
        %932 = vmatpush1.msra.mxu0 0.0
        %933 = vmatprep.subr.mxu0 0.0
        %934 = vmatpush1.msra.mxu0 0.0
        %935 = vmatprep.subr.mxu0 0.0
        %936 = vmatpush1.msra.mxu0 0.0
        %937 = vmatprep.subr.mxu0 0.0
        %938 = vmatpush1.msra.mxu0 0.0
        %939 = vmatprep.subr.mxu0 0.0
        %940 = vmatpush1.msra.mxu0 0.0
        %941 = vmatprep.subr.mxu0 0.0
        %942 = vmatpush1.msra.mxu0 0.0
        %943 = vmatprep.subr.mxu0 0.0
        %944 = vmatpush1.msra.mxu0 0.0
        %945 = vmatprep.subr.mxu0 0.0
        %946 = vmatpush1.msra.mxu0 0.0
        %947 = vmatprep.subr.mxu0 0.0
        %948 = vmatpush1.msra.mxu0 0.0
        %949 = vmatprep.subr.mxu0 0.0
        %950 = vmatpush1.msra.mxu0 0.0
        %951 = vmatprep.subr.mxu0 0.0
        %952 = vmatpush1.msra.mxu0 0.0
        %953 = vmatprep.subr.mxu0 0.0
        %954 = vmatpush1.msra.mxu0 0.0
        %955 = vmatprep.subr.mxu0 0.0
        %956 = vmatpush1.msra.mxu0 0.0
        %957 = vmatprep.subr.mxu0 0.0
        %958 = vmatpush1.msra.mxu0 0.0
        %959 = vmatprep.subr.mxu0 0.0
        %960 = vmatpush1.msra.mxu0 0.0
        %961 = vmatprep.subr.mxu0 0.0
        %962 = vmatpush1.msra.mxu0 0.0
        %963 = vmatprep.subr.mxu0 0.0
        %964 = vmatpush1.msra.mxu0 0.0
        %965 = vmatprep.subr.mxu0 0.0
        %966 = vmatpush1.msra.mxu0 0.0
        %967 = vmatprep.subr.mxu0 0.0
        %968 = vmatpush1.msra.mxu0 0.0
        %969 = vmatprep.subr.mxu0 0.0
        %970 = vmatpush1.msra.mxu0 0.0
        %971 = vmatprep.subr.mxu0 0.0
        %972 = vmatpush1.msra.mxu0 0.0
        %973 = vmatprep.mubr.f32.mxu0 0.0
        %v974 = vand.u32 %v330, 4294901760
        %975 = vmatmul.mubr.f32.gmra.mrb[0].mxu0 %v974
        %v976 = vpop.f32.mrb[0].mxu0
        %v977 = vadd.f32 %v881, %v976
        %v978 = vpop.f32.mrb[0].mxu0
        %979 = vmatprep.mubr.f32.mxu0 0.0
        %v980 = vand.u32 %v333, 4294901760
        %981 = vmatmul.mubr.f32.gmra.mrb[0].mxu0 %v980
        %v982 = vpop.f32.mrb[0].mxu0
        %v983 = vadd.f32 %v887, %v982
        %v984 = vpop.f32.mrb[0].mxu0
        %985 = vmatprep.mubr.f32.mxu0 0.0
        %v986 = vand.u32 %v336, 4294901760
        %987 = vmatmul.mubr.f32.gmra.mrb[0].mxu0 %v986
        %v988 = vpop.f32.mrb[0].mxu0
        %v989 = vadd.f32 %v893, %v988
        %v990 = vpop.f32.mrb[0].mxu0
        %991 = vmatprep.mubr.f32.mxu0 0.0
        %v992 = vand.u32 %v339, 4294901760
        %993 = vmatmul.mubr.f32.gmra.mrb[0].mxu0 %v992
        %v994 = vpop.f32.mrb[0].mxu0
        %v995 = vadd.f32 %v899, %v994
        %v996 = vpop.f32.mrb[0].mxu0
        %997 = vdwg.mxu0
        %v998 = vld [vmem:[%s279] sm:$0x1]
        %v999 = vlaneseq
        %v1000 = vshrl.u32 %v999, 7
        %v1001 = vsub.s32 0, %v1000
        %v1002 = vrot.slane %v998, %v1001
        %vm1003 = vcmp.eq.s32.totalorder %v296, %v1002
        %vm1004 = vcmp.eq.s32.totalorder %v297, %v1002
        %vm1005 = vcmp.eq.s32.totalorder %v298, %v1002
        %vm1006 = vcmp.eq.s32.totalorder %v299, %v1002
        %vm1007 = vcmp.eq.s32.totalorder %v300, %v1002
        %vm1008 = vcmp.eq.s32.totalorder %v301, %v1002
        %vm1009 = vcmp.eq.s32.totalorder %v302, %v1002
        %v1010 = vsel %vm1003, 1, 0
        %v1011 = vsel %vm1004, 1, 0
        %v1012 = vsel %vm1005, 1, 0
        %v1013 = vsel %vm1006, 1, 0
        %v1014 = vsel %vm1007, 1, 0
        %v1015 = vsel %vm1008, 1, 0
        %v1016 = vsel %vm1009, 1, 0
        %v1017 = vcvt.s32.f32 %v1010
        %v1018 = vcvt.s32.f32 %v1011
        %v1019 = vcvt.s32.f32 %v1012
        %v1020 = vcvt.s32.f32 %v1013
        %v1021 = vcvt.s32.f32 %v1014
        %v1022 = vcvt.s32.f32 %v1015
        %v1023 = vcvt.s32.f32 %v1016
        %v1025 = vsel %vm341, %v1023, 0
        %1027 = vmatprep.subr.mxu0 0.0
        %v1028 = vand.u32 %v1017, 4294901760
        %1029 = vmatpush1.msra.mxu0 %v1028
        %1030 = vmatprep.subr.mxu0 0.0
        %v1031 = vand.u32 %v1018, 4294901760
        %1032 = vmatpush1.msra.mxu0 %v1031
        %1033 = vmatprep.subr.mxu0 0.0
        %v1034 = vand.u32 %v1019, 4294901760
        %1035 = vmatpush1.msra.mxu0 %v1034
        %1036 = vmatprep.subr.mxu0 0.0
        %v1037 = vand.u32 %v1020, 4294901760
        %1038 = vmatpush1.msra.mxu0 %v1037
        %1039 = vmatprep.subr.mxu0 0.0
        %v1040 = vand.u32 %v1021, 4294901760
        %1041 = vmatpush1.msra.mxu0 %v1040
        %1042 = vmatprep.subr.mxu0 0.0
        %v1043 = vand.u32 %v1022, 4294901760
        %1044 = vmatpush1.msra.mxu0 %v1043
        %1045 = vmatprep.subr.mxu0 0.0
        %v1046 = vand.u32 %v1025, 4294901760
        %1047 = vmatpush1.msra.mxu0 %v1046
        %1048 = vmatprep.subr.mxu0 0.0
        %1049 = vmatpush1.msra.mxu0 0.0
        %1050 = vmatprep.subr.mxu0 0.0
        %1051 = vmatpush1.msra.mxu0 0.0
        %1052 = vmatprep.subr.mxu0 0.0
        %1053 = vmatpush1.msra.mxu0 0.0
        %1054 = vmatprep.subr.mxu0 0.0
        %1055 = vmatpush1.msra.mxu0 0.0
        %1056 = vmatprep.subr.mxu0 0.0
        %1057 = vmatpush1.msra.mxu0 0.0
        %1058 = vmatprep.subr.mxu0 0.0
        %1059 = vmatpush1.msra.mxu0 0.0
        %1060 = vmatprep.subr.mxu0 0.0
        %1061 = vmatpush1.msra.mxu0 0.0
        %1062 = vmatprep.subr.mxu0 0.0
        %1063 = vmatpush1.msra.mxu0 0.0
        %1064 = vmatprep.subr.mxu0 0.0
        %1065 = vmatpush1.msra.mxu0 0.0
        %1066 = vmatprep.subr.mxu0 0.0
        %1067 = vmatpush1.msra.mxu0 0.0
        %1068 = vmatprep.subr.mxu0 0.0
        %1069 = vmatpush1.msra.mxu0 0.0
        %1070 = vmatprep.subr.mxu0 0.0
        %1071 = vmatpush1.msra.mxu0 0.0
        %1072 = vmatprep.subr.mxu0 0.0
        %1073 = vmatpush1.msra.mxu0 0.0
        %1074 = vmatprep.subr.mxu0 0.0
        %1075 = vmatpush1.msra.mxu0 0.0
        %1076 = vmatprep.subr.mxu0 0.0
        %1077 = vmatpush1.msra.mxu0 0.0
        %1078 = vmatprep.subr.mxu0 0.0
        %1079 = vmatpush1.msra.mxu0 0.0
        %1080 = vmatprep.subr.mxu0 0.0
        %1081 = vmatpush1.msra.mxu0 0.0
        %1082 = vmatprep.subr.mxu0 0.0
        %1083 = vmatpush1.msra.mxu0 0.0
        %1084 = vmatprep.subr.mxu0 0.0
        %1085 = vmatpush1.msra.mxu0 0.0
        %1086 = vmatprep.subr.mxu0 0.0
        %1087 = vmatpush1.msra.mxu0 0.0
        %1088 = vmatprep.subr.mxu0 0.0
        %1089 = vmatpush1.msra.mxu0 0.0
        %1090 = vmatprep.subr.mxu0 0.0
        %1091 = vmatpush1.msra.mxu0 0.0
        %1092 = vmatprep.subr.mxu0 0.0
        %1093 = vmatpush1.msra.mxu0 0.0
        %1094 = vmatprep.subr.mxu0 0.0
        %1095 = vmatpush1.msra.mxu0 0.0
        %1096 = vmatprep.subr.mxu0 0.0
        %1097 = vmatpush1.msra.mxu0 0.0
        %1098 = vmatprep.mubr.f32.mxu0 0.0
        %v1099 = vand.u32 %v330, 4294901760
        %v1100 = vsub.f32 %v330, %v1099
        %v1101 = vand.u32 %v1100, 4294901760
        %v1102 = vsub.f32 %v1100, %v1101
        %v1103 = vand.u32 %v1102, 4294901760
        %1104 = vmatmul.mubr.f32.gmra.mrb[0].mxu0 %v1103
        %v1105 = vpop.f32.mrb[0].mxu0
        %v1106 = vadd.f32 0.0, %v1105
        %v1107 = vpop.f32.mrb[0].mxu0
        %1108 = vmatprep.mubr.f32.mxu0 0.0
        %v1109 = vand.u32 %v333, 4294901760
        %v1110 = vsub.f32 %v333, %v1109
        %v1111 = vand.u32 %v1110, 4294901760
        %v1112 = vsub.f32 %v1110, %v1111
        %v1113 = vand.u32 %v1112, 4294901760
        %1114 = vmatmul.mubr.f32.gmra.mrb[0].mxu0 %v1113
        %v1115 = vpop.f32.mrb[0].mxu0
        %v1116 = vadd.f32 0.0, %v1115
        %v1117 = vpop.f32.mrb[0].mxu0
        %1118 = vmatprep.mubr.f32.mxu0 0.0
        %v1119 = vand.u32 %v336, 4294901760
        %v1120 = vsub.f32 %v336, %v1119
        %v1121 = vand.u32 %v1120, 4294901760
        %v1122 = vsub.f32 %v1120, %v1121
        %v1123 = vand.u32 %v1122, 4294901760
        %1124 = vmatmul.mubr.f32.gmra.mrb[0].mxu0 %v1123
        %v1125 = vpop.f32.mrb[0].mxu0
        %v1126 = vadd.f32 0.0, %v1125
        %v1127 = vpop.f32.mrb[0].mxu0
        %1128 = vmatprep.mubr.f32.mxu0 0.0
        %v1129 = vand.u32 %v339, 4294901760
        %v1130 = vsub.f32 %v339, %v1129
        %v1131 = vand.u32 %v1130, 4294901760
        %v1132 = vsub.f32 %v1130, %v1131
        %v1133 = vand.u32 %v1132, 4294901760
        %1134 = vmatmul.mubr.f32.gmra.mrb[0].mxu0 %v1133
        %v1135 = vpop.f32.mrb[0].mxu0
        %v1136 = vadd.f32 0.0, %v1135
        %v1137 = vpop.f32.mrb[0].mxu0
        %1138 = vdwg.mxu0
        %1139 = vmatprep.subr.mxu0 0.0
        %v1140 = vand.u32 %v1017, 4294901760
        %v1141 = vsub.f32 %v1017, %v1140
        %v1142 = vand.u32 %v1141, 4294901760
        %v1143 = vsub.f32 %v1141, %v1142
        %v1144 = vand.u32 %v1143, 4294901760
        %1145 = vmatpush1.msra.mxu0 %v1144
        %1146 = vmatprep.subr.mxu0 0.0
        %v1147 = vand.u32 %v1018, 4294901760
        %v1148 = vsub.f32 %v1018, %v1147
        %v1149 = vand.u32 %v1148, 4294901760
        %v1150 = vsub.f32 %v1148, %v1149
        %v1151 = vand.u32 %v1150, 4294901760
        %1152 = vmatpush1.msra.mxu0 %v1151
        %1153 = vmatprep.subr.mxu0 0.0
        %v1154 = vand.u32 %v1019, 4294901760
        %v1155 = vsub.f32 %v1019, %v1154
        %v1156 = vand.u32 %v1155, 4294901760
        %v1157 = vsub.f32 %v1155, %v1156
        %v1158 = vand.u32 %v1157, 4294901760
        %1159 = vmatpush1.msra.mxu0 %v1158
        %1160 = vmatprep.subr.mxu0 0.0
        %v1161 = vand.u32 %v1020, 4294901760
        %v1162 = vsub.f32 %v1020, %v1161
        %v1163 = vand.u32 %v1162, 4294901760
        %v1164 = vsub.f32 %v1162, %v1163
        %v1165 = vand.u32 %v1164, 4294901760
        %1166 = vmatpush1.msra.mxu0 %v1165
        %1167 = vmatprep.subr.mxu0 0.0
        %v1168 = vand.u32 %v1021, 4294901760
        %v1169 = vsub.f32 %v1021, %v1168
        %v1170 = vand.u32 %v1169, 4294901760
        %v1171 = vsub.f32 %v1169, %v1170
        %v1172 = vand.u32 %v1171, 4294901760
        %1173 = vmatpush1.msra.mxu0 %v1172
        %1174 = vmatprep.subr.mxu0 0.0
        %v1175 = vand.u32 %v1022, 4294901760
        %v1176 = vsub.f32 %v1022, %v1175
        %v1177 = vand.u32 %v1176, 4294901760
        %v1178 = vsub.f32 %v1176, %v1177
        %v1179 = vand.u32 %v1178, 4294901760
        %1180 = vmatpush1.msra.mxu0 %v1179
        %1181 = vmatprep.subr.mxu0 0.0
        %v1182 = vand.u32 %v1025, 4294901760
        %v1183 = vsub.f32 %v1025, %v1182
        %v1184 = vand.u32 %v1183, 4294901760
        %v1185 = vsub.f32 %v1183, %v1184
        %v1186 = vand.u32 %v1185, 4294901760
        %1187 = vmatpush1.msra.mxu0 %v1186
        %1188 = vmatprep.subr.mxu0 0.0
        %1189 = vmatpush1.msra.mxu0 0.0
        %1190 = vmatprep.subr.mxu0 0.0
        %1191 = vmatpush1.msra.mxu0 0.0
        %1192 = vmatprep.subr.mxu0 0.0
        %1193 = vmatpush1.msra.mxu0 0.0
        %1194 = vmatprep.subr.mxu0 0.0
        %1195 = vmatpush1.msra.mxu0 0.0
        %1196 = vmatprep.subr.mxu0 0.0
        %1197 = vmatpush1.msra.mxu0 0.0
        %1198 = vmatprep.subr.mxu0 0.0
        %1199 = vmatpush1.msra.mxu0 0.0
        %1200 = vmatprep.subr.mxu0 0.0
        %1201 = vmatpush1.msra.mxu0 0.0
        %1202 = vmatprep.subr.mxu0 0.0
        %1203 = vmatpush1.msra.mxu0 0.0
        %1204 = vmatprep.subr.mxu0 0.0
        %1205 = vmatpush1.msra.mxu0 0.0
        %1206 = vmatprep.subr.mxu0 0.0
        %1207 = vmatpush1.msra.mxu0 0.0
        %1208 = vmatprep.subr.mxu0 0.0
        %1209 = vmatpush1.msra.mxu0 0.0
        %1210 = vmatprep.subr.mxu0 0.0
        %1211 = vmatpush1.msra.mxu0 0.0
        %1212 = vmatprep.subr.mxu0 0.0
        %1213 = vmatpush1.msra.mxu0 0.0
        %1214 = vmatprep.subr.mxu0 0.0
        %1215 = vmatpush1.msra.mxu0 0.0
        %1216 = vmatprep.subr.mxu0 0.0
        %1217 = vmatpush1.msra.mxu0 0.0
        %1218 = vmatprep.subr.mxu0 0.0
        %1219 = vmatpush1.msra.mxu0 0.0
        %1220 = vmatprep.subr.mxu0 0.0
        %1221 = vmatpush1.msra.mxu0 0.0
        %1222 = vmatprep.subr.mxu0 0.0
        %1223 = vmatpush1.msra.mxu0 0.0
        %1224 = vmatprep.subr.mxu0 0.0
        %1225 = vmatpush1.msra.mxu0 0.0
        %1226 = vmatprep.subr.mxu0 0.0
        %1227 = vmatpush1.msra.mxu0 0.0
        %1228 = vmatprep.subr.mxu0 0.0
        %1229 = vmatpush1.msra.mxu0 0.0
        %1230 = vmatprep.subr.mxu0 0.0
        %1231 = vmatpush1.msra.mxu0 0.0
        %1232 = vmatprep.subr.mxu0 0.0
        %1233 = vmatpush1.msra.mxu0 0.0
        %1234 = vmatprep.subr.mxu0 0.0
        %1235 = vmatpush1.msra.mxu0 0.0
        %1236 = vmatprep.subr.mxu0 0.0
        %1237 = vmatpush1.msra.mxu0 0.0
        %1238 = vmatprep.mubr.f32.mxu0 0.0
        %v1239 = vand.u32 %v330, 4294901760
        %1240 = vmatmul.mubr.f32.gmra.mrb[0].mxu0 %v1239
        %v1241 = vpop.f32.mrb[0].mxu0
        %v1242 = vadd.f32 %v1106, %v1241
        %v1243 = vpop.f32.mrb[0].mxu0
        %1244 = vmatprep.mubr.f32.mxu0 0.0
        %v1245 = vand.u32 %v333, 4294901760
        %1246 = vmatmul.mubr.f32.gmra.mrb[0].mxu0 %v1245
        %v1247 = vpop.f32.mrb[0].mxu0
        %v1248 = vadd.f32 %v1116, %v1247
        %v1249 = vpop.f32.mrb[0].mxu0
        %1250 = vmatprep.mubr.f32.mxu0 0.0
        %v1251 = vand.u32 %v336, 4294901760
        %1252 = vmatmul.mubr.f32.gmra.mrb[0].mxu0 %v1251
        %v1253 = vpop.f32.mrb[0].mxu0
        %v1254 = vadd.f32 %v1126, %v1253
        %v1255 = vpop.f32.mrb[0].mxu0
        %1256 = vmatprep.mubr.f32.mxu0 0.0
        %v1257 = vand.u32 %v339, 4294901760
        %1258 = vmatmul.mubr.f32.gmra.mrb[0].mxu0 %v1257
        %v1259 = vpop.f32.mrb[0].mxu0
        %v1260 = vadd.f32 %v1136, %v1259
        %v1261 = vpop.f32.mrb[0].mxu0
        %1262 = vdwg.mxu0
        %1263 = vmatprep.subr.mxu0 0.0
        %v1264 = vand.u32 %v1017, 4294901760
        %v1265 = vsub.f32 %v1017, %v1264
        %1266 = vmatpush1.msra.mxu0 %v1265
        %1267 = vmatprep.subr.mxu0 0.0
        %v1268 = vand.u32 %v1018, 4294901760
        %v1269 = vsub.f32 %v1018, %v1268
        %1270 = vmatpush1.msra.mxu0 %v1269
        %1271 = vmatprep.subr.mxu0 0.0
        %v1272 = vand.u32 %v1019, 4294901760
        %v1273 = vsub.f32 %v1019, %v1272
        %1274 = vmatpush1.msra.mxu0 %v1273
        %1275 = vmatprep.subr.mxu0 0.0
        %v1276 = vand.u32 %v1020, 4294901760
        %v1277 = vsub.f32 %v1020, %v1276
        %1278 = vmatpush1.msra.mxu0 %v1277
        %1279 = vmatprep.subr.mxu0 0.0
        %v1280 = vand.u32 %v1021, 4294901760
        %v1281 = vsub.f32 %v1021, %v1280
        %1282 = vmatpush1.msra.mxu0 %v1281
        %1283 = vmatprep.subr.mxu0 0.0
        %v1284 = vand.u32 %v1022, 4294901760
        %v1285 = vsub.f32 %v1022, %v1284
        %1286 = vmatpush1.msra.mxu0 %v1285
        %1287 = vmatprep.subr.mxu0 0.0
        %v1288 = vand.u32 %v1025, 4294901760
        %v1289 = vsub.f32 %v1025, %v1288
        %1290 = vmatpush1.msra.mxu0 %v1289
        %1291 = vmatprep.subr.mxu0 0.0
        %1292 = vmatpush1.msra.mxu0 0.0
        %1293 = vmatprep.subr.mxu0 0.0
        %1294 = vmatpush1.msra.mxu0 0.0
        %1295 = vmatprep.subr.mxu0 0.0
        %1296 = vmatpush1.msra.mxu0 0.0
        %1297 = vmatprep.subr.mxu0 0.0
        %1298 = vmatpush1.msra.mxu0 0.0
        %1299 = vmatprep.subr.mxu0 0.0
        %1300 = vmatpush1.msra.mxu0 0.0
        %1301 = vmatprep.subr.mxu0 0.0
        %1302 = vmatpush1.msra.mxu0 0.0
        %1303 = vmatprep.subr.mxu0 0.0
        %1304 = vmatpush1.msra.mxu0 0.0
        %1305 = vmatprep.subr.mxu0 0.0
        %1306 = vmatpush1.msra.mxu0 0.0
        %1307 = vmatprep.subr.mxu0 0.0
        %1308 = vmatpush1.msra.mxu0 0.0
        %1309 = vmatprep.subr.mxu0 0.0
        %1310 = vmatpush1.msra.mxu0 0.0
        %1311 = vmatprep.subr.mxu0 0.0
        %1312 = vmatpush1.msra.mxu0 0.0
        %1313 = vmatprep.subr.mxu0 0.0
        %1314 = vmatpush1.msra.mxu0 0.0
        %1315 = vmatprep.subr.mxu0 0.0
        %1316 = vmatpush1.msra.mxu0 0.0
        %1317 = vmatprep.subr.mxu0 0.0
        %1318 = vmatpush1.msra.mxu0 0.0
        %1319 = vmatprep.subr.mxu0 0.0
        %1320 = vmatpush1.msra.mxu0 0.0
        %1321 = vmatprep.subr.mxu0 0.0
        %1322 = vmatpush1.msra.mxu0 0.0
        %1323 = vmatprep.subr.mxu0 0.0
        %1324 = vmatpush1.msra.mxu0 0.0
        %1325 = vmatprep.subr.mxu0 0.0
        %1326 = vmatpush1.msra.mxu0 0.0
        %1327 = vmatprep.subr.mxu0 0.0
        %1328 = vmatpush1.msra.mxu0 0.0
        %1329 = vmatprep.subr.mxu0 0.0
        %1330 = vmatpush1.msra.mxu0 0.0
        %1331 = vmatprep.subr.mxu0 0.0
        %1332 = vmatpush1.msra.mxu0 0.0
        %1333 = vmatprep.subr.mxu0 0.0
        %1334 = vmatpush1.msra.mxu0 0.0
        %1335 = vmatprep.subr.mxu0 0.0
        %1336 = vmatpush1.msra.mxu0 0.0
        %1337 = vmatprep.subr.mxu0 0.0
        %1338 = vmatpush1.msra.mxu0 0.0
        %1339 = vmatprep.subr.mxu0 0.0
        %1340 = vmatpush1.msra.mxu0 0.0
        %1341 = vmatprep.mubr.f32.mxu0 0.0
        %v1342 = vand.u32 %v330, 4294901760
        %v1343 = vsub.f32 %v330, %v1342
        %1344 = vmatmul.mubr.f32.gmra.mrb[0].mxu0 %v1343
        %v1345 = vpop.f32.mrb[0].mxu0
        %v1346 = vadd.f32 %v1242, %v1345
        %v1347 = vpop.f32.mrb[0].mxu0
        %1348 = vmatprep.mubr.f32.mxu0 0.0
        %v1349 = vand.u32 %v333, 4294901760
        %v1350 = vsub.f32 %v333, %v1349
        %1351 = vmatmul.mubr.f32.gmra.mrb[0].mxu0 %v1350
        %v1352 = vpop.f32.mrb[0].mxu0
        %v1353 = vadd.f32 %v1248, %v1352
        %v1354 = vpop.f32.mrb[0].mxu0
        %1355 = vmatprep.mubr.f32.mxu0 0.0
        %v1356 = vand.u32 %v336, 4294901760
        %v1357 = vsub.f32 %v336, %v1356
        %1358 = vmatmul.mubr.f32.gmra.mrb[0].mxu0 %v1357
        %v1359 = vpop.f32.mrb[0].mxu0
        %v1360 = vadd.f32 %v1254, %v1359
        %v1361 = vpop.f32.mrb[0].mxu0
        %1362 = vmatprep.mubr.f32.mxu0 0.0
        %v1363 = vand.u32 %v339, 4294901760
        %v1364 = vsub.f32 %v339, %v1363
        %1365 = vmatmul.mubr.f32.gmra.mrb[0].mxu0 %v1364
        %v1366 = vpop.f32.mrb[0].mxu0
        %v1367 = vadd.f32 %v1260, %v1366
        %v1368 = vpop.f32.mrb[0].mxu0
        %1369 = vdwg.mxu0
        %1370 = vmatprep.subr.mxu0 0.0
        %v1371 = vand.u32 %v1017, 4294901760
        %1372 = vmatpush1.msra.mxu0 %v1371
        %1373 = vmatprep.subr.mxu0 0.0
        %v1374 = vand.u32 %v1018, 4294901760
        %1375 = vmatpush1.msra.mxu0 %v1374
        %1376 = vmatprep.subr.mxu0 0.0
        %v1377 = vand.u32 %v1019, 4294901760
        %1378 = vmatpush1.msra.mxu0 %v1377
        %1379 = vmatprep.subr.mxu0 0.0
        %v1380 = vand.u32 %v1020, 4294901760
        %1381 = vmatpush1.msra.mxu0 %v1380
        %1382 = vmatprep.subr.mxu0 0.0
        %v1383 = vand.u32 %v1021, 4294901760
        %1384 = vmatpush1.msra.mxu0 %v1383
        %1385 = vmatprep.subr.mxu0 0.0
        %v1386 = vand.u32 %v1022, 4294901760
        %1387 = vmatpush1.msra.mxu0 %v1386
        %1388 = vmatprep.subr.mxu0 0.0
        %v1389 = vand.u32 %v1025, 4294901760
        %1390 = vmatpush1.msra.mxu0 %v1389
        %1391 = vmatprep.subr.mxu0 0.0
        %1392 = vmatpush1.msra.mxu0 0.0
        %1393 = vmatprep.subr.mxu0 0.0
        %1394 = vmatpush1.msra.mxu0 0.0
        %1395 = vmatprep.subr.mxu0 0.0
        %1396 = vmatpush1.msra.mxu0 0.0
        %1397 = vmatprep.subr.mxu0 0.0
        %1398 = vmatpush1.msra.mxu0 0.0
        %1399 = vmatprep.subr.mxu0 0.0
        %1400 = vmatpush1.msra.mxu0 0.0
        %1401 = vmatprep.subr.mxu0 0.0
        %1402 = vmatpush1.msra.mxu0 0.0
        %1403 = vmatprep.subr.mxu0 0.0
        %1404 = vmatpush1.msra.mxu0 0.0
        %1405 = vmatprep.subr.mxu0 0.0
        %1406 = vmatpush1.msra.mxu0 0.0
        %1407 = vmatprep.subr.mxu0 0.0
        %1408 = vmatpush1.msra.mxu0 0.0
        %1409 = vmatprep.subr.mxu0 0.0
        %1410 = vmatpush1.msra.mxu0 0.0
        %1411 = vmatprep.subr.mxu0 0.0
        %1412 = vmatpush1.msra.mxu0 0.0
        %1413 = vmatprep.subr.mxu0 0.0
        %1414 = vmatpush1.msra.mxu0 0.0
        %1415 = vmatprep.subr.mxu0 0.0
        %1416 = vmatpush1.msra.mxu0 0.0
        %1417 = vmatprep.subr.mxu0 0.0
        %1418 = vmatpush1.msra.mxu0 0.0
        %1419 = vmatprep.subr.mxu0 0.0
        %1420 = vmatpush1.msra.mxu0 0.0
        %1421 = vmatprep.subr.mxu0 0.0
        %1422 = vmatpush1.msra.mxu0 0.0
        %1423 = vmatprep.subr.mxu0 0.0
        %1424 = vmatpush1.msra.mxu0 0.0
        %1425 = vmatprep.subr.mxu0 0.0
        %1426 = vmatpush1.msra.mxu0 0.0
        %1427 = vmatprep.subr.mxu0 0.0
        %1428 = vmatpush1.msra.mxu0 0.0
        %1429 = vmatprep.subr.mxu0 0.0
        %1430 = vmatpush1.msra.mxu0 0.0
        %1431 = vmatprep.subr.mxu0 0.0
        %1432 = vmatpush1.msra.mxu0 0.0
        %1433 = vmatprep.subr.mxu0 0.0
        %1434 = vmatpush1.msra.mxu0 0.0
        %1435 = vmatprep.subr.mxu0 0.0
        %1436 = vmatpush1.msra.mxu0 0.0
        %1437 = vmatprep.subr.mxu0 0.0
        %1438 = vmatpush1.msra.mxu0 0.0
        %1439 = vmatprep.subr.mxu0 0.0
        %1440 = vmatpush1.msra.mxu0 0.0
        %1441 = vmatprep.mubr.f32.mxu0 0.0
        %v1442 = vand.u32 %v330, 4294901760
        %v1443 = vsub.f32 %v330, %v1442
        %v1444 = vand.u32 %v1443, 4294901760
        %1445 = vmatmul.mubr.f32.gmra.mrb[0].mxu0 %v1444
        %v1446 = vpop.f32.mrb[0].mxu0
        %v1447 = vadd.f32 %v1346, %v1446
        %v1448 = vpop.f32.mrb[0].mxu0
        %1449 = vmatprep.mubr.f32.mxu0 0.0
        %v1450 = vand.u32 %v333, 4294901760
        %v1451 = vsub.f32 %v333, %v1450
        %v1452 = vand.u32 %v1451, 4294901760
        %1453 = vmatmul.mubr.f32.gmra.mrb[0].mxu0 %v1452
        %v1454 = vpop.f32.mrb[0].mxu0
        %v1455 = vadd.f32 %v1353, %v1454
        %v1456 = vpop.f32.mrb[0].mxu0
        %1457 = vmatprep.mubr.f32.mxu0 0.0
        %v1458 = vand.u32 %v336, 4294901760
        %v1459 = vsub.f32 %v336, %v1458
        %v1460 = vand.u32 %v1459, 4294901760
        %1461 = vmatmul.mubr.f32.gmra.mrb[0].mxu0 %v1460
        %v1462 = vpop.f32.mrb[0].mxu0
        %v1463 = vadd.f32 %v1360, %v1462
        %v1464 = vpop.f32.mrb[0].mxu0
        %1465 = vmatprep.mubr.f32.mxu0 0.0
        %v1466 = vand.u32 %v339, 4294901760
        %v1467 = vsub.f32 %v339, %v1466
        %v1468 = vand.u32 %v1467, 4294901760
        %1469 = vmatmul.mubr.f32.gmra.mrb[0].mxu0 %v1468
        %v1470 = vpop.f32.mrb[0].mxu0
        %v1471 = vadd.f32 %v1367, %v1470
        %v1472 = vpop.f32.mrb[0].mxu0
        %1473 = vdwg.mxu0
        %1474 = vmatprep.subr.mxu0 0.0
        %v1475 = vand.u32 %v1017, 4294901760
        %v1476 = vsub.f32 %v1017, %v1475
        %v1477 = vand.u32 %v1476, 4294901760
        %1478 = vmatpush1.msra.mxu0 %v1477
        %1479 = vmatprep.subr.mxu0 0.0
        %v1480 = vand.u32 %v1018, 4294901760
        %v1481 = vsub.f32 %v1018, %v1480
        %v1482 = vand.u32 %v1481, 4294901760
        %1483 = vmatpush1.msra.mxu0 %v1482
        %1484 = vmatprep.subr.mxu0 0.0
        %v1485 = vand.u32 %v1019, 4294901760
        %v1486 = vsub.f32 %v1019, %v1485
        %v1487 = vand.u32 %v1486, 4294901760
        %1488 = vmatpush1.msra.mxu0 %v1487
        %1489 = vmatprep.subr.mxu0 0.0
        %v1490 = vand.u32 %v1020, 4294901760
        %v1491 = vsub.f32 %v1020, %v1490
        %v1492 = vand.u32 %v1491, 4294901760
        %1493 = vmatpush1.msra.mxu0 %v1492
        %1494 = vmatprep.subr.mxu0 0.0
        %v1495 = vand.u32 %v1021, 4294901760
        %v1496 = vsub.f32 %v1021, %v1495
        %v1497 = vand.u32 %v1496, 4294901760
        %1498 = vmatpush1.msra.mxu0 %v1497
        %1499 = vmatprep.subr.mxu0 0.0
        %v1500 = vand.u32 %v1022, 4294901760
        %v1501 = vsub.f32 %v1022, %v1500
        %v1502 = vand.u32 %v1501, 4294901760
        %1503 = vmatpush1.msra.mxu0 %v1502
        %1504 = vmatprep.subr.mxu0 0.0
        %v1505 = vand.u32 %v1025, 4294901760
        %v1506 = vsub.f32 %v1025, %v1505
        %v1507 = vand.u32 %v1506, 4294901760
        %1508 = vmatpush1.msra.mxu0 %v1507
        %1509 = vmatprep.subr.mxu0 0.0
        %1510 = vmatpush1.msra.mxu0 0.0
        %1511 = vmatprep.subr.mxu0 0.0
        %1512 = vmatpush1.msra.mxu0 0.0
        %1513 = vmatprep.subr.mxu0 0.0
        %1514 = vmatpush1.msra.mxu0 0.0
        %1515 = vmatprep.subr.mxu0 0.0
        %1516 = vmatpush1.msra.mxu0 0.0
        %1517 = vmatprep.subr.mxu0 0.0
        %1518 = vmatpush1.msra.mxu0 0.0
        %1519 = vmatprep.subr.mxu0 0.0
        %1520 = vmatpush1.msra.mxu0 0.0
        %1521 = vmatprep.subr.mxu0 0.0
        %1522 = vmatpush1.msra.mxu0 0.0
        %1523 = vmatprep.subr.mxu0 0.0
        %1524 = vmatpush1.msra.mxu0 0.0
        %1525 = vmatprep.subr.mxu0 0.0
        %1526 = vmatpush1.msra.mxu0 0.0
        %1527 = vmatprep.subr.mxu0 0.0
        %1528 = vmatpush1.msra.mxu0 0.0
        %1529 = vmatprep.subr.mxu0 0.0
        %1530 = vmatpush1.msra.mxu0 0.0
        %1531 = vmatprep.subr.mxu0 0.0
        %1532 = vmatpush1.msra.mxu0 0.0
        %1533 = vmatprep.subr.mxu0 0.0
        %1534 = vmatpush1.msra.mxu0 0.0
        %1535 = vmatprep.subr.mxu0 0.0
        %1536 = vmatpush1.msra.mxu0 0.0
        %1537 = vmatprep.subr.mxu0 0.0
        %1538 = vmatpush1.msra.mxu0 0.0
        %1539 = vmatprep.subr.mxu0 0.0
        %1540 = vmatpush1.msra.mxu0 0.0
        %1541 = vmatprep.subr.mxu0 0.0
        %1542 = vmatpush1.msra.mxu0 0.0
        %1543 = vmatprep.subr.mxu0 0.0
        %1544 = vmatpush1.msra.mxu0 0.0
        %1545 = vmatprep.subr.mxu0 0.0
        %1546 = vmatpush1.msra.mxu0 0.0
        %1547 = vmatprep.subr.mxu0 0.0
        %1548 = vmatpush1.msra.mxu0 0.0
        %1549 = vmatprep.subr.mxu0 0.0
        %1550 = vmatpush1.msra.mxu0 0.0
        %1551 = vmatprep.subr.mxu0 0.0
        %1552 = vmatpush1.msra.mxu0 0.0
        %1553 = vmatprep.subr.mxu0 0.0
        %1554 = vmatpush1.msra.mxu0 0.0
        %1555 = vmatprep.subr.mxu0 0.0
        %1556 = vmatpush1.msra.mxu0 0.0
        %1557 = vmatprep.subr.mxu0 0.0
        %1558 = vmatpush1.msra.mxu0 0.0
        %1559 = vmatprep.mubr.f32.mxu0 0.0
        %v1560 = vand.u32 %v330, 4294901760
        %1561 = vmatmul.mubr.f32.gmra.mrb[0].mxu0 %v1560
        %v1562 = vpop.f32.mrb[0].mxu0
        %v1563 = vadd.f32 %v1447, %v1562
        %v1564 = vpop.f32.mrb[0].mxu0
        %1565 = vmatprep.mubr.f32.mxu0 0.0
        %v1566 = vand.u32 %v333, 4294901760
        %1567 = vmatmul.mubr.f32.gmra.mrb[0].mxu0 %v1566
        %v1568 = vpop.f32.mrb[0].mxu0
        %v1569 = vadd.f32 %v1455, %v1568
        %v1570 = vpop.f32.mrb[0].mxu0
        %1571 = vmatprep.mubr.f32.mxu0 0.0
        %v1572 = vand.u32 %v336, 4294901760
        %1573 = vmatmul.mubr.f32.gmra.mrb[0].mxu0 %v1572
        %v1574 = vpop.f32.mrb[0].mxu0
        %v1575 = vadd.f32 %v1463, %v1574
        %v1576 = vpop.f32.mrb[0].mxu0
        %1577 = vmatprep.mubr.f32.mxu0 0.0
        %v1578 = vand.u32 %v339, 4294901760
        %1579 = vmatmul.mubr.f32.gmra.mrb[0].mxu0 %v1578
        %v1580 = vpop.f32.mrb[0].mxu0
        %v1581 = vadd.f32 %v1471, %v1580
        %v1582 = vpop.f32.mrb[0].mxu0
        %1583 = vdwg.mxu0
        %1584 = vmatprep.subr.mxu0 0.0
        %v1585 = vand.u32 %v1017, 4294901760
        %1586 = vmatpush1.msra.mxu0 %v1585
        %1587 = vmatprep.subr.mxu0 0.0
        %v1588 = vand.u32 %v1018, 4294901760
        %1589 = vmatpush1.msra.mxu0 %v1588
        %1590 = vmatprep.subr.mxu0 0.0
        %v1591 = vand.u32 %v1019, 4294901760
        %1592 = vmatpush1.msra.mxu0 %v1591
        %1593 = vmatprep.subr.mxu0 0.0
        %v1594 = vand.u32 %v1020, 4294901760
        %1595 = vmatpush1.msra.mxu0 %v1594
        %1596 = vmatprep.subr.mxu0 0.0
        %v1597 = vand.u32 %v1021, 4294901760
        %1598 = vmatpush1.msra.mxu0 %v1597
        %1599 = vmatprep.subr.mxu0 0.0
        %v1600 = vand.u32 %v1022, 4294901760
        %1601 = vmatpush1.msra.mxu0 %v1600
        %1602 = vmatprep.subr.mxu0 0.0
        %v1603 = vand.u32 %v1025, 4294901760
        %1604 = vmatpush1.msra.mxu0 %v1603
        %1605 = vmatprep.subr.mxu0 0.0
        %1606 = vmatpush1.msra.mxu0 0.0
        %1607 = vmatprep.subr.mxu0 0.0
        %1608 = vmatpush1.msra.mxu0 0.0
        %1609 = vmatprep.subr.mxu0 0.0
        %1610 = vmatpush1.msra.mxu0 0.0
        %1611 = vmatprep.subr.mxu0 0.0
        %1612 = vmatpush1.msra.mxu0 0.0
        %1613 = vmatprep.subr.mxu0 0.0
        %1614 = vmatpush1.msra.mxu0 0.0
        %1615 = vmatprep.subr.mxu0 0.0
        %1616 = vmatpush1.msra.mxu0 0.0
        %1617 = vmatprep.subr.mxu0 0.0
        %1618 = vmatpush1.msra.mxu0 0.0
        %1619 = vmatprep.subr.mxu0 0.0
        %1620 = vmatpush1.msra.mxu0 0.0
        %1621 = vmatprep.subr.mxu0 0.0
        %1622 = vmatpush1.msra.mxu0 0.0
        %1623 = vmatprep.subr.mxu0 0.0
        %1624 = vmatpush1.msra.mxu0 0.0
        %1625 = vmatprep.subr.mxu0 0.0
        %1626 = vmatpush1.msra.mxu0 0.0
        %1627 = vmatprep.subr.mxu0 0.0
        %1628 = vmatpush1.msra.mxu0 0.0
        %1629 = vmatprep.subr.mxu0 0.0
        %1630 = vmatpush1.msra.mxu0 0.0
        %1631 = vmatprep.subr.mxu0 0.0
        %1632 = vmatpush1.msra.mxu0 0.0
        %1633 = vmatprep.subr.mxu0 0.0
        %1634 = vmatpush1.msra.mxu0 0.0
        %1635 = vmatprep.subr.mxu0 0.0
        %1636 = vmatpush1.msra.mxu0 0.0
        %1637 = vmatprep.subr.mxu0 0.0
        %1638 = vmatpush1.msra.mxu0 0.0
        %1639 = vmatprep.subr.mxu0 0.0
        %1640 = vmatpush1.msra.mxu0 0.0
        %1641 = vmatprep.subr.mxu0 0.0
        %1642 = vmatpush1.msra.mxu0 0.0
        %1643 = vmatprep.subr.mxu0 0.0
        %1644 = vmatpush1.msra.mxu0 0.0
        %1645 = vmatprep.subr.mxu0 0.0
        %1646 = vmatpush1.msra.mxu0 0.0
        %1647 = vmatprep.subr.mxu0 0.0
        %1648 = vmatpush1.msra.mxu0 0.0
        %1649 = vmatprep.subr.mxu0 0.0
        %1650 = vmatpush1.msra.mxu0 0.0
        %1651 = vmatprep.subr.mxu0 0.0
        %1652 = vmatpush1.msra.mxu0 0.0
        %1653 = vmatprep.subr.mxu0 0.0
        %1654 = vmatpush1.msra.mxu0 0.0
        %1655 = vmatprep.mubr.f32.mxu0 0.0
        %v1656 = vand.u32 %v330, 4294901760
        %1657 = vmatmul.mubr.f32.gmra.mrb[0].mxu0 %v1656
        %v1658 = vpop.f32.mrb[0].mxu0
        %v1659 = vadd.f32 %v1563, %v1658
        %v1660 = vpop.f32.mrb[0].mxu0
        %1661 = vmatprep.mubr.f32.mxu0 0.0
        %v1662 = vand.u32 %v333, 4294901760
        %1663 = vmatmul.mubr.f32.gmra.mrb[0].mxu0 %v1662
        %v1664 = vpop.f32.mrb[0].mxu0
        %v1665 = vadd.f32 %v1569, %v1664
        %v1666 = vpop.f32.mrb[0].mxu0
        %1667 = vmatprep.mubr.f32.mxu0 0.0
        %v1668 = vand.u32 %v336, 4294901760
        %1669 = vmatmul.mubr.f32.gmra.mrb[0].mxu0 %v1668
        %v1670 = vpop.f32.mrb[0].mxu0
        %v1671 = vadd.f32 %v1575, %v1670
        %v1672 = vpop.f32.mrb[0].mxu0
        %1673 = vmatprep.mubr.f32.mxu0 0.0
        %v1674 = vand.u32 %v339, 4294901760
        %1675 = vmatmul.mubr.f32.gmra.mrb[0].mxu0 %v1674
        %v1676 = vpop.f32.mrb[0].mxu0
        %v1677 = vadd.f32 %v1581, %v1676
        %v1678 = vpop.f32.mrb[0].mxu0
        %1679 = vdwg.mxu0
        %v1680 = vld [vmem:[%s282] sm:$0x1]
        %v1681 = vlaneseq
        %v1682 = vshrl.u32 %v1681, 7
        %v1683 = vsub.s32 0, %v1682
        %v1684 = vrot.slane %v1680, %v1683
        %vm1685 = vcmp.eq.s32.totalorder %v296, %v1684
        %v1686 = vsel %vm1685, 1, 0
        %v1687 = vcvt.s32.f32 %v1686
        %vm1688 = vcmask 48128
        %v1690 = vsel %vm1688, %v290, 0
        %v1693 = vsel %vm1688, %v291, 0
        %v1696 = vsel %vm1688, %v292, 0
        %v1699 = vsel %vm1688, %v293, 0
        %vm1701 = vcmask 1045504
        %v1703 = vsel %vm1701, %v1687, 0
        %1705 = vmatprep.subr.mxu0 0.0
        %v1706 = vand.u32 %v1703, 4294901760
        %1707 = vmatpush1.msra.mxu0 %v1706
        %1708 = vmatprep.subr.mxu0 0.0
        %1709 = vmatpush1.msra.mxu0 0.0
        %1710 = vmatprep.subr.mxu0 0.0
        %1711 = vmatpush1.msra.mxu0 0.0
        %1712 = vmatprep.subr.mxu0 0.0
        %1713 = vmatpush1.msra.mxu0 0.0
        %1714 = vmatprep.subr.mxu0 0.0
        %1715 = vmatpush1.msra.mxu0 0.0
        %1716 = vmatprep.subr.mxu0 0.0
        %1717 = vmatpush1.msra.mxu0 0.0
        %1718 = vmatprep.subr.mxu0 0.0
        %1719 = vmatpush1.msra.mxu0 0.0
        %1720 = vmatprep.subr.mxu0 0.0
        %1721 = vmatpush1.msra.mxu0 0.0
        %1722 = vmatprep.subr.mxu0 0.0
        %1723 = vmatpush1.msra.mxu0 0.0
        %1724 = vmatprep.subr.mxu0 0.0
        %1725 = vmatpush1.msra.mxu0 0.0
        %1726 = vmatprep.subr.mxu0 0.0
        %1727 = vmatpush1.msra.mxu0 0.0
        %1728 = vmatprep.subr.mxu0 0.0
        %1729 = vmatpush1.msra.mxu0 0.0
        %1730 = vmatprep.subr.mxu0 0.0
        %1731 = vmatpush1.msra.mxu0 0.0
        %1732 = vmatprep.subr.mxu0 0.0
        %1733 = vmatpush1.msra.mxu0 0.0
        %1734 = vmatprep.subr.mxu0 0.0
        %1735 = vmatpush1.msra.mxu0 0.0
        %1736 = vmatprep.subr.mxu0 0.0
        %1737 = vmatpush1.msra.mxu0 0.0
        %1738 = vmatprep.subr.mxu0 0.0
        %1739 = vmatpush1.msra.mxu0 0.0
        %1740 = vmatprep.subr.mxu0 0.0
        %1741 = vmatpush1.msra.mxu0 0.0
        %1742 = vmatprep.subr.mxu0 0.0
        %1743 = vmatpush1.msra.mxu0 0.0
        %1744 = vmatprep.subr.mxu0 0.0
        %1745 = vmatpush1.msra.mxu0 0.0
        %1746 = vmatprep.subr.mxu0 0.0
        %1747 = vmatpush1.msra.mxu0 0.0
        %1748 = vmatprep.subr.mxu0 0.0
        %1749 = vmatpush1.msra.mxu0 0.0
        %1750 = vmatprep.subr.mxu0 0.0
        %1751 = vmatpush1.msra.mxu0 0.0
        %1752 = vmatprep.subr.mxu0 0.0
        %1753 = vmatpush1.msra.mxu0 0.0
        %1754 = vmatprep.subr.mxu0 0.0
        %1755 = vmatpush1.msra.mxu0 0.0
        %1756 = vmatprep.subr.mxu0 0.0
        %1757 = vmatpush1.msra.mxu0 0.0
        %1758 = vmatprep.subr.mxu0 0.0
        %1759 = vmatpush1.msra.mxu0 0.0
        %1760 = vmatprep.subr.mxu0 0.0
        %1761 = vmatpush1.msra.mxu0 0.0
        %1762 = vmatprep.subr.mxu0 0.0
        %1763 = vmatpush1.msra.mxu0 0.0
        %1764 = vmatprep.subr.mxu0 0.0
        %1765 = vmatpush1.msra.mxu0 0.0
        %1766 = vmatprep.subr.mxu0 0.0
        %1767 = vmatpush1.msra.mxu0 0.0
        %1768 = vmatprep.subr.mxu0 0.0
        %1769 = vmatpush1.msra.mxu0 0.0
        %1770 = vmatprep.mubr.f32.mxu0 0.0
        %v1771 = vand.u32 %v1690, 4294901760
        %v1772 = vsub.f32 %v1690, %v1771
        %v1773 = vand.u32 %v1772, 4294901760
        %v1774 = vsub.f32 %v1772, %v1773
        %v1775 = vand.u32 %v1774, 4294901760
        %1776 = vmatmul.mubr.f32.gmra.mrb[0].mxu0 %v1775
        %v1777 = vpop.f32.mrb[0].mxu0
        %v1778 = vadd.f32 0.0, %v1777
        %v1779 = vpop.f32.mrb[0].mxu0
        %1780 = vmatprep.mubr.f32.mxu0 0.0
        %v1781 = vand.u32 %v1693, 4294901760
        %v1782 = vsub.f32 %v1693, %v1781
        %v1783 = vand.u32 %v1782, 4294901760
        %v1784 = vsub.f32 %v1782, %v1783
        %v1785 = vand.u32 %v1784, 4294901760
        %1786 = vmatmul.mubr.f32.gmra.mrb[0].mxu0 %v1785
        %v1787 = vpop.f32.mrb[0].mxu0
        %v1788 = vadd.f32 0.0, %v1787
        %v1789 = vpop.f32.mrb[0].mxu0
        %1790 = vmatprep.mubr.f32.mxu0 0.0
        %v1791 = vand.u32 %v1696, 4294901760
        %v1792 = vsub.f32 %v1696, %v1791
        %v1793 = vand.u32 %v1792, 4294901760
        %v1794 = vsub.f32 %v1792, %v1793
        %v1795 = vand.u32 %v1794, 4294901760
        %1796 = vmatmul.mubr.f32.gmra.mrb[0].mxu0 %v1795
        %v1797 = vpop.f32.mrb[0].mxu0
        %v1798 = vadd.f32 0.0, %v1797
        %v1799 = vpop.f32.mrb[0].mxu0
        %1800 = vmatprep.mubr.f32.mxu0 0.0
        %v1801 = vand.u32 %v1699, 4294901760
        %v1802 = vsub.f32 %v1699, %v1801
        %v1803 = vand.u32 %v1802, 4294901760
        %v1804 = vsub.f32 %v1802, %v1803
        %v1805 = vand.u32 %v1804, 4294901760
        %1806 = vmatmul.mubr.f32.gmra.mrb[0].mxu0 %v1805
        %v1807 = vpop.f32.mrb[0].mxu0
        %v1808 = vadd.f32 0.0, %v1807
        %v1809 = vpop.f32.mrb[0].mxu0
        %1810 = vdwg.mxu0
        %1811 = vmatprep.subr.mxu0 0.0
        %v1812 = vand.u32 %v1703, 4294901760
        %v1813 = vsub.f32 %v1703, %v1812
        %v1814 = vand.u32 %v1813, 4294901760
        %v1815 = vsub.f32 %v1813, %v1814
        %v1816 = vand.u32 %v1815, 4294901760
        %1817 = vmatpush1.msra.mxu0 %v1816
        %1818 = vmatprep.subr.mxu0 0.0
        %1819 = vmatpush1.msra.mxu0 0.0
        %1820 = vmatprep.subr.mxu0 0.0
        %1821 = vmatpush1.msra.mxu0 0.0
        %1822 = vmatprep.subr.mxu0 0.0
        %1823 = vmatpush1.msra.mxu0 0.0
        %1824 = vmatprep.subr.mxu0 0.0
        %1825 = vmatpush1.msra.mxu0 0.0
        %1826 = vmatprep.subr.mxu0 0.0
        %1827 = vmatpush1.msra.mxu0 0.0
        %1828 = vmatprep.subr.mxu0 0.0
        %1829 = vmatpush1.msra.mxu0 0.0
        %1830 = vmatprep.subr.mxu0 0.0
        %1831 = vmatpush1.msra.mxu0 0.0
        %1832 = vmatprep.subr.mxu0 0.0
        %1833 = vmatpush1.msra.mxu0 0.0
        %1834 = vmatprep.subr.mxu0 0.0
        %1835 = vmatpush1.msra.mxu0 0.0
        %1836 = vmatprep.subr.mxu0 0.0
        %1837 = vmatpush1.msra.mxu0 0.0
        %1838 = vmatprep.subr.mxu0 0.0
        %1839 = vmatpush1.msra.mxu0 0.0
        %1840 = vmatprep.subr.mxu0 0.0
        %1841 = vmatpush1.msra.mxu0 0.0
        %1842 = vmatprep.subr.mxu0 0.0
        %1843 = vmatpush1.msra.mxu0 0.0
        %1844 = vmatprep.subr.mxu0 0.0
        %1845 = vmatpush1.msra.mxu0 0.0
        %1846 = vmatprep.subr.mxu0 0.0
        %1847 = vmatpush1.msra.mxu0 0.0
        %1848 = vmatprep.subr.mxu0 0.0
        %1849 = vmatpush1.msra.mxu0 0.0
        %1850 = vmatprep.subr.mxu0 0.0
        %1851 = vmatpush1.msra.mxu0 0.0
        %1852 = vmatprep.subr.mxu0 0.0
        %1853 = vmatpush1.msra.mxu0 0.0
        %1854 = vmatprep.subr.mxu0 0.0
        %1855 = vmatpush1.msra.mxu0 0.0
        %1856 = vmatprep.subr.mxu0 0.0
        %1857 = vmatpush1.msra.mxu0 0.0
        %1858 = vmatprep.subr.mxu0 0.0
        %1859 = vmatpush1.msra.mxu0 0.0
        %1860 = vmatprep.subr.mxu0 0.0
        %1861 = vmatpush1.msra.mxu0 0.0
        %1862 = vmatprep.subr.mxu0 0.0
        %1863 = vmatpush1.msra.mxu0 0.0
        %1864 = vmatprep.subr.mxu0 0.0
        %1865 = vmatpush1.msra.mxu0 0.0
        %1866 = vmatprep.subr.mxu0 0.0
        %1867 = vmatpush1.msra.mxu0 0.0
        %1868 = vmatprep.subr.mxu0 0.0
        %1869 = vmatpush1.msra.mxu0 0.0
        %1870 = vmatprep.subr.mxu0 0.0
        %1871 = vmatpush1.msra.mxu0 0.0
        %1872 = vmatprep.subr.mxu0 0.0
        %1873 = vmatpush1.msra.mxu0 0.0
        %1874 = vmatprep.subr.mxu0 0.0
        %1875 = vmatpush1.msra.mxu0 0.0
        %1876 = vmatprep.subr.mxu0 0.0
        %1877 = vmatpush1.msra.mxu0 0.0
        %1878 = vmatprep.subr.mxu0 0.0
        %1879 = vmatpush1.msra.mxu0 0.0
        %1880 = vmatprep.mubr.f32.mxu0 0.0
        %v1881 = vand.u32 %v1690, 4294901760
        %1882 = vmatmul.mubr.f32.gmra.mrb[0].mxu0 %v1881
        %v1883 = vpop.f32.mrb[0].mxu0
        %v1884 = vadd.f32 %v1778, %v1883
        %v1885 = vpop.f32.mrb[0].mxu0
        %1886 = vmatprep.mubr.f32.mxu0 0.0
        %v1887 = vand.u32 %v1693, 4294901760
        %1888 = vmatmul.mubr.f32.gmra.mrb[0].mxu0 %v1887
        %v1889 = vpop.f32.mrb[0].mxu0
        %v1890 = vadd.f32 %v1788, %v1889
        %v1891 = vpop.f32.mrb[0].mxu0
        %1892 = vmatprep.mubr.f32.mxu0 0.0
        %v1893 = vand.u32 %v1696, 4294901760
        %1894 = vmatmul.mubr.f32.gmra.mrb[0].mxu0 %v1893
        %v1895 = vpop.f32.mrb[0].mxu0
        %v1896 = vadd.f32 %v1798, %v1895
        %v1897 = vpop.f32.mrb[0].mxu0
        %1898 = vmatprep.mubr.f32.mxu0 0.0
        %v1899 = vand.u32 %v1699, 4294901760
        %1900 = vmatmul.mubr.f32.gmra.mrb[0].mxu0 %v1899
        %v1901 = vpop.f32.mrb[0].mxu0
        %v1902 = vadd.f32 %v1808, %v1901
        %v1903 = vpop.f32.mrb[0].mxu0
        %1904 = vdwg.mxu0
        %1905 = vmatprep.subr.mxu0 0.0
        %v1906 = vand.u32 %v1703, 4294901760
        %v1907 = vsub.f32 %v1703, %v1906
        %1908 = vmatpush1.msra.mxu0 %v1907
        %1909 = vmatprep.subr.mxu0 0.0
        %1910 = vmatpush1.msra.mxu0 0.0
        %1911 = vmatprep.subr.mxu0 0.0
        %1912 = vmatpush1.msra.mxu0 0.0
        %1913 = vmatprep.subr.mxu0 0.0
        %1914 = vmatpush1.msra.mxu0 0.0
        %1915 = vmatprep.subr.mxu0 0.0
        %1916 = vmatpush1.msra.mxu0 0.0
        %1917 = vmatprep.subr.mxu0 0.0
        %1918 = vmatpush1.msra.mxu0 0.0
        %1919 = vmatprep.subr.mxu0 0.0
        %1920 = vmatpush1.msra.mxu0 0.0
        %1921 = vmatprep.subr.mxu0 0.0
        %1922 = vmatpush1.msra.mxu0 0.0
        %1923 = vmatprep.subr.mxu0 0.0
        %1924 = vmatpush1.msra.mxu0 0.0
        %1925 = vmatprep.subr.mxu0 0.0
        %1926 = vmatpush1.msra.mxu0 0.0
        %1927 = vmatprep.subr.mxu0 0.0
        %1928 = vmatpush1.msra.mxu0 0.0
        %1929 = vmatprep.subr.mxu0 0.0
        %1930 = vmatpush1.msra.mxu0 0.0
        %1931 = vmatprep.subr.mxu0 0.0
        %1932 = vmatpush1.msra.mxu0 0.0
        %1933 = vmatprep.subr.mxu0 0.0
        %1934 = vmatpush1.msra.mxu0 0.0
        %1935 = vmatprep.subr.mxu0 0.0
        %1936 = vmatpush1.msra.mxu0 0.0
        %1937 = vmatprep.subr.mxu0 0.0
        %1938 = vmatpush1.msra.mxu0 0.0
        %1939 = vmatprep.subr.mxu0 0.0
        %1940 = vmatpush1.msra.mxu0 0.0
        %1941 = vmatprep.subr.mxu0 0.0
        %1942 = vmatpush1.msra.mxu0 0.0
        %1943 = vmatprep.subr.mxu0 0.0
        %1944 = vmatpush1.msra.mxu0 0.0
        %1945 = vmatprep.subr.mxu0 0.0
        %1946 = vmatpush1.msra.mxu0 0.0
        %1947 = vmatprep.subr.mxu0 0.0
        %1948 = vmatpush1.msra.mxu0 0.0
        %1949 = vmatprep.subr.mxu0 0.0
        %1950 = vmatpush1.msra.mxu0 0.0
        %1951 = vmatprep.subr.mxu0 0.0
        %1952 = vmatpush1.msra.mxu0 0.0
        %1953 = vmatprep.subr.mxu0 0.0
        %1954 = vmatpush1.msra.mxu0 0.0
        %1955 = vmatprep.subr.mxu0 0.0
        %1956 = vmatpush1.msra.mxu0 0.0
        %1957 = vmatprep.subr.mxu0 0.0
        %1958 = vmatpush1.msra.mxu0 0.0
        %1959 = vmatprep.subr.mxu0 0.0
        %1960 = vmatpush1.msra.mxu0 0.0
        %1961 = vmatprep.subr.mxu0 0.0
        %1962 = vmatpush1.msra.mxu0 0.0
        %1963 = vmatprep.subr.mxu0 0.0
        %1964 = vmatpush1.msra.mxu0 0.0
        %1965 = vmatprep.subr.mxu0 0.0
        %1966 = vmatpush1.msra.mxu0 0.0
        %1967 = vmatprep.subr.mxu0 0.0
        %1968 = vmatpush1.msra.mxu0 0.0
        %1969 = vmatprep.subr.mxu0 0.0
        %1970 = vmatpush1.msra.mxu0 0.0
        %1971 = vmatprep.mubr.f32.mxu0 0.0
        %v1972 = vand.u32 %v1690, 4294901760
        %v1973 = vsub.f32 %v1690, %v1972
        %1974 = vmatmul.mubr.f32.gmra.mrb[0].mxu0 %v1973
        %v1975 = vpop.f32.mrb[0].mxu0
        %v1976 = vadd.f32 %v1884, %v1975
        %v1977 = vpop.f32.mrb[0].mxu0
        %1978 = vmatprep.mubr.f32.mxu0 0.0
        %v1979 = vand.u32 %v1693, 4294901760
        %v1980 = vsub.f32 %v1693, %v1979
        %1981 = vmatmul.mubr.f32.gmra.mrb[0].mxu0 %v1980
        %v1982 = vpop.f32.mrb[0].mxu0
        %v1983 = vadd.f32 %v1890, %v1982
        %v1984 = vpop.f32.mrb[0].mxu0
        %1985 = vmatprep.mubr.f32.mxu0 0.0
        %v1986 = vand.u32 %v1696, 4294901760
        %v1987 = vsub.f32 %v1696, %v1986
        %1988 = vmatmul.mubr.f32.gmra.mrb[0].mxu0 %v1987
        %v1989 = vpop.f32.mrb[0].mxu0
        %v1990 = vadd.f32 %v1896, %v1989
        %v1991 = vpop.f32.mrb[0].mxu0
        %1992 = vmatprep.mubr.f32.mxu0 0.0
        %v1993 = vand.u32 %v1699, 4294901760
        %v1994 = vsub.f32 %v1699, %v1993
        %1995 = vmatmul.mubr.f32.gmra.mrb[0].mxu0 %v1994
        %v1996 = vpop.f32.mrb[0].mxu0
        %v1997 = vadd.f32 %v1902, %v1996
        %v1998 = vpop.f32.mrb[0].mxu0
        %1999 = vdwg.mxu0
        %2000 = vmatprep.subr.mxu0 0.0
        %v2001 = vand.u32 %v1703, 4294901760
        %2002 = vmatpush1.msra.mxu0 %v2001
        %2003 = vmatprep.subr.mxu0 0.0
        %2004 = vmatpush1.msra.mxu0 0.0
        %2005 = vmatprep.subr.mxu0 0.0
        %2006 = vmatpush1.msra.mxu0 0.0
        %2007 = vmatprep.subr.mxu0 0.0
        %2008 = vmatpush1.msra.mxu0 0.0
        %2009 = vmatprep.subr.mxu0 0.0
        %2010 = vmatpush1.msra.mxu0 0.0
        %2011 = vmatprep.subr.mxu0 0.0
        %2012 = vmatpush1.msra.mxu0 0.0
        %2013 = vmatprep.subr.mxu0 0.0
        %2014 = vmatpush1.msra.mxu0 0.0
        %2015 = vmatprep.subr.mxu0 0.0
        %2016 = vmatpush1.msra.mxu0 0.0
        %2017 = vmatprep.subr.mxu0 0.0
        %2018 = vmatpush1.msra.mxu0 0.0
        %2019 = vmatprep.subr.mxu0 0.0
        %2020 = vmatpush1.msra.mxu0 0.0
        %2021 = vmatprep.subr.mxu0 0.0
        %2022 = vmatpush1.msra.mxu0 0.0
        %2023 = vmatprep.subr.mxu0 0.0
        %2024 = vmatpush1.msra.mxu0 0.0
        %2025 = vmatprep.subr.mxu0 0.0
        %2026 = vmatpush1.msra.mxu0 0.0
        %2027 = vmatprep.subr.mxu0 0.0
        %2028 = vmatpush1.msra.mxu0 0.0
        %2029 = vmatprep.subr.mxu0 0.0
        %2030 = vmatpush1.msra.mxu0 0.0
        %2031 = vmatprep.subr.mxu0 0.0
        %2032 = vmatpush1.msra.mxu0 0.0
        %2033 = vmatprep.subr.mxu0 0.0
        %2034 = vmatpush1.msra.mxu0 0.0
        %2035 = vmatprep.subr.mxu0 0.0
        %2036 = vmatpush1.msra.mxu0 0.0
        %2037 = vmatprep.subr.mxu0 0.0
        %2038 = vmatpush1.msra.mxu0 0.0
        %2039 = vmatprep.subr.mxu0 0.0
        %2040 = vmatpush1.msra.mxu0 0.0
        %2041 = vmatprep.subr.mxu0 0.0
        %2042 = vmatpush1.msra.mxu0 0.0
        %2043 = vmatprep.subr.mxu0 0.0
        %2044 = vmatpush1.msra.mxu0 0.0
        %2045 = vmatprep.subr.mxu0 0.0
        %2046 = vmatpush1.msra.mxu0 0.0
        %2047 = vmatprep.subr.mxu0 0.0
        %2048 = vmatpush1.msra.mxu0 0.0
        %2049 = vmatprep.subr.mxu0 0.0
        %2050 = vmatpush1.msra.mxu0 0.0
        %2051 = vmatprep.subr.mxu0 0.0
        %2052 = vmatpush1.msra.mxu0 0.0
        %2053 = vmatprep.subr.mxu0 0.0
        %2054 = vmatpush1.msra.mxu0 0.0
        %2055 = vmatprep.subr.mxu0 0.0
        %2056 = vmatpush1.msra.mxu0 0.0
        %2057 = vmatprep.subr.mxu0 0.0
        %2058 = vmatpush1.msra.mxu0 0.0
        %2059 = vmatprep.subr.mxu0 0.0
        %2060 = vmatpush1.msra.mxu0 0.0
        %2061 = vmatprep.subr.mxu0 0.0
        %2062 = vmatpush1.msra.mxu0 0.0
        %2063 = vmatprep.subr.mxu0 0.0
        %2064 = vmatpush1.msra.mxu0 0.0
        %2065 = vmatprep.mubr.f32.mxu0 0.0
        %v2066 = vand.u32 %v1690, 4294901760
        %v2067 = vsub.f32 %v1690, %v2066
        %v2068 = vand.u32 %v2067, 4294901760
        %2069 = vmatmul.mubr.f32.gmra.mrb[0].mxu0 %v2068
        %v2070 = vpop.f32.mrb[0].mxu0
        %v2071 = vadd.f32 %v1976, %v2070
        %v2072 = vpop.f32.mrb[0].mxu0
        %2073 = vmatprep.mubr.f32.mxu0 0.0
        %v2074 = vand.u32 %v1693, 4294901760
        %v2075 = vsub.f32 %v1693, %v2074
        %v2076 = vand.u32 %v2075, 4294901760
        %2077 = vmatmul.mubr.f32.gmra.mrb[0].mxu0 %v2076
        %v2078 = vpop.f32.mrb[0].mxu0
        %v2079 = vadd.f32 %v1983, %v2078
        %v2080 = vpop.f32.mrb[0].mxu0
        %2081 = vmatprep.mubr.f32.mxu0 0.0
        %v2082 = vand.u32 %v1696, 4294901760
        %v2083 = vsub.f32 %v1696, %v2082
        %v2084 = vand.u32 %v2083, 4294901760
        %2085 = vmatmul.mubr.f32.gmra.mrb[0].mxu0 %v2084
        %v2086 = vpop.f32.mrb[0].mxu0
        %v2087 = vadd.f32 %v1990, %v2086
        %v2088 = vpop.f32.mrb[0].mxu0
        %2089 = vmatprep.mubr.f32.mxu0 0.0
        %v2090 = vand.u32 %v1699, 4294901760
        %v2091 = vsub.f32 %v1699, %v2090
        %v2092 = vand.u32 %v2091, 4294901760
        %2093 = vmatmul.mubr.f32.gmra.mrb[0].mxu0 %v2092
        %v2094 = vpop.f32.mrb[0].mxu0
        %v2095 = vadd.f32 %v1997, %v2094
        %v2096 = vpop.f32.mrb[0].mxu0
        %2097 = vdwg.mxu0
        %2098 = vmatprep.subr.mxu0 0.0
        %v2099 = vand.u32 %v1703, 4294901760
        %v2100 = vsub.f32 %v1703, %v2099
        %v2101 = vand.u32 %v2100, 4294901760
        %2102 = vmatpush1.msra.mxu0 %v2101
        %2103 = vmatprep.subr.mxu0 0.0
        %2104 = vmatpush1.msra.mxu0 0.0
        %2105 = vmatprep.subr.mxu0 0.0
        %2106 = vmatpush1.msra.mxu0 0.0
        %2107 = vmatprep.subr.mxu0 0.0
        %2108 = vmatpush1.msra.mxu0 0.0
        %2109 = vmatprep.subr.mxu0 0.0
        %2110 = vmatpush1.msra.mxu0 0.0
        %2111 = vmatprep.subr.mxu0 0.0
        %2112 = vmatpush1.msra.mxu0 0.0
        %2113 = vmatprep.subr.mxu0 0.0
        %2114 = vmatpush1.msra.mxu0 0.0
        %2115 = vmatprep.subr.mxu0 0.0
        %2116 = vmatpush1.msra.mxu0 0.0
        %2117 = vmatprep.subr.mxu0 0.0
        %2118 = vmatpush1.msra.mxu0 0.0
        %2119 = vmatprep.subr.mxu0 0.0
        %2120 = vmatpush1.msra.mxu0 0.0
        %2121 = vmatprep.subr.mxu0 0.0
        %2122 = vmatpush1.msra.mxu0 0.0
        %2123 = vmatprep.subr.mxu0 0.0
        %2124 = vmatpush1.msra.mxu0 0.0
        %2125 = vmatprep.subr.mxu0 0.0
        %2126 = vmatpush1.msra.mxu0 0.0
        %2127 = vmatprep.subr.mxu0 0.0
        %2128 = vmatpush1.msra.mxu0 0.0
        %2129 = vmatprep.subr.mxu0 0.0
        %2130 = vmatpush1.msra.mxu0 0.0
        %2131 = vmatprep.subr.mxu0 0.0
        %2132 = vmatpush1.msra.mxu0 0.0
        %2133 = vmatprep.subr.mxu0 0.0
        %2134 = vmatpush1.msra.mxu0 0.0
        %2135 = vmatprep.subr.mxu0 0.0
        %2136 = vmatpush1.msra.mxu0 0.0
        %2137 = vmatprep.subr.mxu0 0.0
        %2138 = vmatpush1.msra.mxu0 0.0
        %2139 = vmatprep.subr.mxu0 0.0
        %2140 = vmatpush1.msra.mxu0 0.0
        %2141 = vmatprep.subr.mxu0 0.0
        %2142 = vmatpush1.msra.mxu0 0.0
        %2143 = vmatprep.subr.mxu0 0.0
        %2144 = vmatpush1.msra.mxu0 0.0
        %2145 = vmatprep.subr.mxu0 0.0
        %2146 = vmatpush1.msra.mxu0 0.0
        %2147 = vmatprep.subr.mxu0 0.0
        %2148 = vmatpush1.msra.mxu0 0.0
        %2149 = vmatprep.subr.mxu0 0.0
        %2150 = vmatpush1.msra.mxu0 0.0
        %2151 = vmatprep.subr.mxu0 0.0
        %2152 = vmatpush1.msra.mxu0 0.0
        %2153 = vmatprep.subr.mxu0 0.0
        %2154 = vmatpush1.msra.mxu0 0.0
        %2155 = vmatprep.subr.mxu0 0.0
        %2156 = vmatpush1.msra.mxu0 0.0
        %2157 = vmatprep.subr.mxu0 0.0
        %2158 = vmatpush1.msra.mxu0 0.0
        %2159 = vmatprep.subr.mxu0 0.0
        %2160 = vmatpush1.msra.mxu0 0.0
        %2161 = vmatprep.subr.mxu0 0.0
        %2162 = vmatpush1.msra.mxu0 0.0
        %2163 = vmatprep.subr.mxu0 0.0
        %2164 = vmatpush1.msra.mxu0 0.0
        %2165 = vmatprep.mubr.f32.mxu0 0.0
        %v2166 = vand.u32 %v1690, 4294901760
        %2167 = vmatmul.mubr.f32.gmra.mrb[0].mxu0 %v2166
        %v2168 = vpop.f32.mrb[0].mxu0
        %v2169 = vadd.f32 %v2071, %v2168
        %v2170 = vpop.f32.mrb[0].mxu0
        %2171 = vmatprep.mubr.f32.mxu0 0.0
        %v2172 = vand.u32 %v1693, 4294901760
        %2173 = vmatmul.mubr.f32.gmra.mrb[0].mxu0 %v2172
        %v2174 = vpop.f32.mrb[0].mxu0
        %v2175 = vadd.f32 %v2079, %v2174
        %v2176 = vpop.f32.mrb[0].mxu0
        %2177 = vmatprep.mubr.f32.mxu0 0.0
        %v2178 = vand.u32 %v1696, 4294901760
        %2179 = vmatmul.mubr.f32.gmra.mrb[0].mxu0 %v2178
        %v2180 = vpop.f32.mrb[0].mxu0
        %v2181 = vadd.f32 %v2087, %v2180
        %v2182 = vpop.f32.mrb[0].mxu0
        %2183 = vmatprep.mubr.f32.mxu0 0.0
        %v2184 = vand.u32 %v1699, 4294901760
        %2185 = vmatmul.mubr.f32.gmra.mrb[0].mxu0 %v2184
        %v2186 = vpop.f32.mrb[0].mxu0
        %v2187 = vadd.f32 %v2095, %v2186
        %v2188 = vpop.f32.mrb[0].mxu0
        %2189 = vdwg.mxu0
        %2190 = vmatprep.subr.mxu0 0.0
        %v2191 = vand.u32 %v1703, 4294901760
        %2192 = vmatpush1.msra.mxu0 %v2191
        %2193 = vmatprep.subr.mxu0 0.0
        %2194 = vmatpush1.msra.mxu0 0.0
        %2195 = vmatprep.subr.mxu0 0.0
        %2196 = vmatpush1.msra.mxu0 0.0
        %2197 = vmatprep.subr.mxu0 0.0
        %2198 = vmatpush1.msra.mxu0 0.0
        %2199 = vmatprep.subr.mxu0 0.0
        %2200 = vmatpush1.msra.mxu0 0.0
        %2201 = vmatprep.subr.mxu0 0.0
        %2202 = vmatpush1.msra.mxu0 0.0
        %2203 = vmatprep.subr.mxu0 0.0
        %2204 = vmatpush1.msra.mxu0 0.0
        %2205 = vmatprep.subr.mxu0 0.0
        %2206 = vmatpush1.msra.mxu0 0.0
        %2207 = vmatprep.subr.mxu0 0.0
        %2208 = vmatpush1.msra.mxu0 0.0
        %2209 = vmatprep.subr.mxu0 0.0
        %2210 = vmatpush1.msra.mxu0 0.0
        %2211 = vmatprep.subr.mxu0 0.0
        %2212 = vmatpush1.msra.mxu0 0.0
        %2213 = vmatprep.subr.mxu0 0.0
        %2214 = vmatpush1.msra.mxu0 0.0
        %2215 = vmatprep.subr.mxu0 0.0
        %2216 = vmatpush1.msra.mxu0 0.0
        %2217 = vmatprep.subr.mxu0 0.0
        %2218 = vmatpush1.msra.mxu0 0.0
        %2219 = vmatprep.subr.mxu0 0.0
        %2220 = vmatpush1.msra.mxu0 0.0
        %2221 = vmatprep.subr.mxu0 0.0
        %2222 = vmatpush1.msra.mxu0 0.0
        %2223 = vmatprep.subr.mxu0 0.0
        %2224 = vmatpush1.msra.mxu0 0.0
        %2225 = vmatprep.subr.mxu0 0.0
        %2226 = vmatpush1.msra.mxu0 0.0
        %2227 = vmatprep.subr.mxu0 0.0
        %2228 = vmatpush1.msra.mxu0 0.0
        %2229 = vmatprep.subr.mxu0 0.0
        %2230 = vmatpush1.msra.mxu0 0.0
        %2231 = vmatprep.subr.mxu0 0.0
        %2232 = vmatpush1.msra.mxu0 0.0
        %2233 = vmatprep.subr.mxu0 0.0
        %2234 = vmatpush1.msra.mxu0 0.0
        %2235 = vmatprep.subr.mxu0 0.0
        %2236 = vmatpush1.msra.mxu0 0.0
        %2237 = vmatprep.subr.mxu0 0.0
        %2238 = vmatpush1.msra.mxu0 0.0
        %2239 = vmatprep.subr.mxu0 0.0
        %2240 = vmatpush1.msra.mxu0 0.0
        %2241 = vmatprep.subr.mxu0 0.0
        %2242 = vmatpush1.msra.mxu0 0.0
        %2243 = vmatprep.subr.mxu0 0.0
        %2244 = vmatpush1.msra.mxu0 0.0
        %2245 = vmatprep.subr.mxu0 0.0
        %2246 = vmatpush1.msra.mxu0 0.0
        %2247 = vmatprep.subr.mxu0 0.0
        %2248 = vmatpush1.msra.mxu0 0.0
        %2249 = vmatprep.subr.mxu0 0.0
        %2250 = vmatpush1.msra.mxu0 0.0
        %2251 = vmatprep.subr.mxu0 0.0
        %2252 = vmatpush1.msra.mxu0 0.0
        %2253 = vmatprep.subr.mxu0 0.0
        %2254 = vmatpush1.msra.mxu0 0.0
        %2255 = vmatprep.mubr.f32.mxu0 0.0
        %v2256 = vand.u32 %v1690, 4294901760
        %2257 = vmatmul.mubr.f32.gmra.mrb[0].mxu0 %v2256
        %v2258 = vpop.f32.mrb[0].mxu0
        %v2259 = vadd.f32 %v2169, %v2258
        %v2260 = vpop.f32.mrb[0].mxu0
        %2261 = vmatprep.mubr.f32.mxu0 0.0
        %v2262 = vand.u32 %v1693, 4294901760
        %2263 = vmatmul.mubr.f32.gmra.mrb[0].mxu0 %v2262
        %v2264 = vpop.f32.mrb[0].mxu0
        %v2265 = vadd.f32 %v2175, %v2264
        %v2266 = vpop.f32.mrb[0].mxu0
        %2267 = vmatprep.mubr.f32.mxu0 0.0
        %v2268 = vand.u32 %v1696, 4294901760
        %2269 = vmatmul.mubr.f32.gmra.mrb[0].mxu0 %v2268
        %v2270 = vpop.f32.mrb[0].mxu0
        %v2271 = vadd.f32 %v2181, %v2270
        %v2272 = vpop.f32.mrb[0].mxu0
        %2273 = vmatprep.mubr.f32.mxu0 0.0
        %v2274 = vand.u32 %v1699, 4294901760
        %2275 = vmatmul.mubr.f32.gmra.mrb[0].mxu0 %v2274
        %v2276 = vpop.f32.mrb[0].mxu0
        %v2277 = vadd.f32 %v2187, %v2276
        %v2278 = vpop.f32.mrb[0].mxu0
        %2279 = vdwg.mxu0
        %v2280 = vmul.f32 %v977, %v1659
        %v2281 = vmul.f32 %v983, %v1665
        %v2282 = vmul.f32 %v989, %v1671
        %v2283 = vmul.f32 %v995, %v1677
        %v2284 = vmul.f32 %v2280, %v2259
        %v2285 = vmul.f32 %v2281, %v2265
        %v2286 = vmul.f32 %v2282, %v2271
        %v2287 = vmul.f32 %v2283, %v2277
        %vm2288 = vcmask 523264
        %v2289 = vsel %vm2288, %v2284, 0.0
        %v2290 = vsel %vm2288, %v2285, 0.0
        %v2291 = vadd.f32 %v2289, %v2290
        %v2292 = vsel %vm2288, %v2286, 0.0
        %v2293 = vadd.f32 %v2291, %v2292
        %v2294 = vsel %vm2288, %v2287, 0.0
        %v2295 = vadd.f32 %v2293, %v2294
        %v2296 = vrot.slane %v2295, 4
        %v2297 = vadd.f32 %v2295, %v2296
        %v2298 = vrot.slane %v2297, 2
        %v2299 = vadd.f32 %v2297, %v2298
        %v2300 = vrot.slane %v2299, 1
        %v2301 = vadd.f32 %v2299, %v2300
        %v2302 = vld [vmem:[%s285] sm:$0x1]
        %s2303 = smul.u32 %s20, 64
        %v2304 = vlaneseq
        %v2305 = vand.u32 %v2304, 127
        %v2306 = vstv %s2303
        %v2307 = vadd.s32 %v2306, %v2305
        %vm2308 = vcmp.lt.s32.totalorder %v2307, 200
        %v2309 = vsel %vm2308, 1, 0
        %v2310 = vcvt.s32.f32 %v2309
        %v2311 = vxor.u32 %v2301, 2147483648
        %v2312 = vmul.f32 %v2311, 1.442695
        %v2313 = vpow.pop %v2312
        %v2314 = vadd.f32 %v2313, 1.0
        %v2315 = vrcp.pop %v2314
        %v2316 = vmul.f32 1.0, %v2315
        %v2317 = vadd.f32 %v2316, 1e-10
        %v2318 = vlog2.pop %v2317
        %v2319 = vmul.f32 %v2318, 0.6931472
        %v2320 = vmul.f32 %v2302, %v2319
        %v2321 = vsub.f32 1.0, %v2302
        %v2322 = vsub.f32 1.0, %v2316
        %v2323 = vadd.f32 %v2322, 1e-10
        %v2324 = vlog2.pop %v2323
        %v2325 = vmul.f32 %v2324, 0.6931472
        %v2326 = vmul.f32 %v2321, %v2325
        %v2327 = vadd.f32 %v2320, %v2326
        %v2328 = vsub.f32 0.0, %v2327
        %v2329 = vmul.f32 %v2328, %v2310
        %vm2330 = vcmask 516096
        %v2331 = vsel %vm2330, %v2329, 0.0
        %2332 = vadd.xlane.f32.xlu0 %v2331
        %v2333 = vpop.xlane.xlu0 %2332
        %v2334 = vrot.slane %v2333, 4
        %v2335 = vadd.f32 %v2333, %v2334
        %v2336 = vrot.slane %v2335, 2
        %v2337 = vadd.f32 %v2335, %v2336
        %v2338 = vrot.slane %v2337, 1
        %v2339 = vadd.f32 %v2337, %v2338
        %s2340 = vtos %v2339
        %v2341 = vstv %s2340
        %2342 = vst [vmem:[%s273] sm:$0xff] %v2341
        %s2343 = sand.u32 %s174, 1
        %s2344 = scalar_lea.sflag [#allocation3], %s2343
        %s2345 = sand.u32 %s174, 1
        %s2346 = smul.addr %s2345, 8
        %s2347 = scalar_lea.vmem [#allocation2], %s2346
        // Predicated region
        $region45: #{tpu_custom_call.1} parent=43 // pred_check
          %p2348 = pneg %p184
        $region46: #{tpu_custom_call.1} parent=43 // pred_check_branch
          %2350 = sbr.rel (%p2348) target = $region48
        $region47: #{tpu_custom_call.1} parent=43 // pred_region
          %s2352 = ssub.s32 128, 128
          %2353 = vsyncadd %s2344, %s2352
          %s2354 = smul.addr %s20, 128
          %s2355 = scalar_lea.hbm %s6, %s2354
          %s2357 = sshll.u32 %s2347, 4
          %s2358 = int_to_ptr.vmem [resolvable:$true] %s2357
          %2360 = dma.vmem_to_hbm [thread:$0]  %s2358, 128, %s2355, %s2344
        $region48: #{tpu_custom_call.1} parent=43 // pred_fallthru
          _
      $region44: #{tpu_custom_call.1} parent=5 // pred_fallthru
        _
      %p2361 = scmp.le.s32.totalorder 2, %s15
      // Predicated region
      $region49: #{tpu_custom_call.1} parent=5 // pred_check
        %p2362 = pneg %p2361
      $region50: #{tpu_custom_call.1} parent=5 // pred_check_branch
        %2364 = sbr.rel (%p2362) target = $region52
      $region51: #{tpu_custom_call.1} parent=5 // pred_region
        %s2365 = ssub.s32 %s15, 2
        // Predicated region
        $region53: #{tpu_custom_call.1} parent=51 // pred_check
          %p2366 = pneg %p190
        $region54: #{tpu_custom_call.1} parent=51 // pred_check_branch
          %2368 = sbr.rel (%p2366) target = $region56
        $region55: #{tpu_custom_call.1} parent=51 // pred_region
          %s2369 = sand.u32 %s175, 1
          %s2370 = scalar_lea.sflag [#allocation3], %s2369
          %s2371 = sand.u32 %s175, 1
          %s2372 = smul.addr %s2371, 8
          %s2373 = scalar_lea.vmem [#allocation2], %s2372
          %2374 = dma.done %s2370, 128
        $region56: #{tpu_custom_call.1} parent=51 // pred_fallthru
          _
      $region52: #{tpu_custom_call.1} parent=5 // pred_fallthru
        _
    $region6: #{tpu_custom_call.1} parent=1 // loop_footer
      %s19 = sadd.s32 1, %s15
    $region7: #{tpu_custom_call.1} parent=1 // loop_footer_branch
      %14 = sbr.rel target = $region3
    $region8: #{tpu_custom_call.1} parent=1 // loop_exit
      _
    %2375 = vsyncpa [#allocation3], 1
    %s2376 = scalar_lea.sflag [#allocation3], 1
    %2377 = vsyncpa %s2376, 1

</llo_original>
